<compile_context>
chip_gen: v7x
topology: tpu7x:2x2x1
jax: 0.10.0
libtpu: 0.0.40
codegen_flags: <defaults>
</compile_context>

<pallas_src>
import functools

import numpy as np
import jax
import jax.numpy as jnp
from jax.experimental import pallas as pl
from jax.experimental.pallas import tpu as pltpu

TBLK = 128                       # terms per grid block (stacked LHS rows = 256)
_SENTINEL = np.int32(2 ** 30)    # index value that never matches a real row


def _round_up(x, m):
    return ((x + m - 1) // m) * m


# ------------------------------ fused kernel ---------------------------------
def _mvcl_kernel(idx_ref, reps_ref, out_ref, *, c_max, compute_dtype):
    tblk = idx_ref.shape[0]
    n_pad = reps_ref.shape[0]
    d_pad = reps_ref.shape[1] // 3

    idx = idx_ref[...]                                   # (tblk, 128) int32
    anchor = idx[:, 0:1]                                 # (tblk, 1)
    away = idx[:, 1:2]                                   # (tblk, 1)

    n_iota = jax.lax.broadcasted_iota(jnp.int32, (tblk, n_pad), 1)

    a_cmp = anchor == n_iota                             # anchor one-hot (bool)
    w_cmp = away == n_iota                               # away   one-hot (bool)

    # C per term = number of non-sentinel close slots (counted on the tiny tile).
    c_count = jnp.sum((idx[:, 2:2 + c_max] < n_pad).astype(jnp.int32),
                      axis=1, keepdims=True)             # (tblk, 1) int32

    # b row = sum_c onehot(close_c) - C * onehot(away); accumulate in int32,
    # cast to the matmul dtype exactly once (values are small ints -> exact).
    b_acc = -(c_count * w_cmp.astype(jnp.int32))
    for c in range(c_max):                               # static, tiny (= sample_num)
        b_acc = b_acc + (idx[:, 2 + c:3 + c] == n_iota).astype(jnp.int32)

    a_sel = a_cmp.astype(compute_dtype)
    b_sel = b_acc.astype(compute_dtype)

    # ONE stacked MXU matmul gathers all six row sets:
    #   rows [0:tblk)       = anchor rows of [G|S|P]
    #   rows [tblk:2*tblk)  = (sum_close - C*away) rows of [G|S|P]
    sel = jnp.concatenate([a_sel, b_sel], axis=0)        # (2*tblk, n_pad)
    res = jax.lax.dot_general(sel, reps_ref[...],
                              (((1,), (0,)), ((), ())),
                              preferred_element_type=jnp.float32)

    ga = res[:tblk, 0 * d_pad:1 * d_pad]
    sa = res[:tblk, 1 * d_pad:2 * d_pad]
    pa = res[:tblk, 2 * d_pad:3 * d_pad]
    gb = res[tblk:, 0 * d_pad:1 * d_pad]
    sb = res[tblk:, 1 * d_pad:2 * d_pad]
    pb = res[tblk:, 2 * d_pad:3 * d_pad]

    # d1 = <g_i, sum_c s_c - C s_away>; d2 = <s_i, sum_c g_c - C g_away>; d3 = <p_i, ...>
    d1 = jnp.sum(ga * sb, axis=1, keepdims=True)
    d2 = jnp.sum(sa * gb, axis=1, keepdims=True)
    d3 = jnp.sum(pa * pb, axis=1, keepdims=True)

    mask = (anchor < n_pad).astype(jnp.float32)          # 1.0 valid term, 0.0 padding

    def log_sig(x):
        # torch.clip(..., min=-70) then log(sigmoid(.)), numerically stable.
        x = jnp.maximum(x, -70.0)
        return jnp.minimum(x, 0.0) - jnp.log(1.0 + jnp.exp(-jnp.abs(x)))

    l2 = jnp.sum(mask * (log_sig(d1) + log_sig(d2)))     # loss_level_2 partial
    l1 = jnp.sum(mask * log_sig(d3))                     # loss_level_1 partial

    # Lane-dense (8, 128) unmasked store; scalars live at [0,0] / [0,1].
    rows = jax.lax.broadcasted_iota(jnp.int32, out_ref.shape, 0)
    lanes = jax.lax.broadcasted_iota(jnp.int32, out_ref.shape, 1)
    out_ref[...] = jnp.where((rows == 0) & (lanes == 0), l2,
                             jnp.where((rows == 0) & (lanes == 1), l1, 0.0))


# ------------------------------ device wrapper --------------------------------
@functools.partial(jax.jit, static_argnames=("c_max", "compute_dtype"))
def _mvcl_device(idx, graph_rep, seq_rep, pred_emb, *, c_max, compute_dtype):
    n, d = graph_rep.shape
    n_pad = _round_up(n, 8)
    d_pad = _round_up(d, 128)
    t_pad, idx_w = idx.shape
    num_blocks = t_pad // TBLK

    def pad2(x):
        return jnp.pad(x.astype(compute_dtype), ((0, n_pad - n), (0, d_pad - d)))

    # Single (n_pad, 3*d_pad) RHS built once outside the grid: [G | S | P].
    reps = jnp.concatenate([pad2(graph_rep), pad2(seq_rep), pad2(pred_emb)], axis=1)

    # Real VMEM footprint (reps single-buffered, idx/out double-buffered,
    # selection matrices + stacked f32 matmul result) with 2x headroom.
    itemsize = jnp.dtype(compute_dtype).itemsize
    est = (n_pad * 3 * d_pad * itemsize
           + 2 * TBLK * idx_w * 4
           + 2 * (2 * TBLK) * n_pad * 4
           + (2 * TBLK) * 3 * d_pad * 4
           + 2 * 8 * 128 * 4)
    vmem_limit = int(min(100 * 2 ** 20, max(32 * 2 ** 20, 2 * est)))

    kernel = functools.partial(_mvcl_kernel, c_max=c_max, compute_dtype=compute_dtype)

    out = pl.pallas_call(
        kernel,
        grid=(num_blocks,),
        in_specs=[
            # packed [anchor | away | close...] ids: one aligned int32 DMA per step
            pl.BlockSpec((TBLK, idx_w), lambda t: (t, 0)),
            # grid-invariant reps: resident, single-buffered
            pl.BlockSpec((n_pad, 3 * d_pad), lambda t: (0, 0),
                         pipeline_mode=pl.Buffered(1)),
        ],
        out_specs=pl.BlockSpec((8, 128), lambda t: (t, 0)),
        out_shape=jax.ShapeDtypeStruct((num_blocks * 8, 128), jnp.float32),
        compiler_params=pltpu.CompilerParams(
            # "parallel" only helps when num_blocks >= 2 (v7x megacore); it is a
            # harmless no-op for a single block.
            dimension_semantics=("parallel",),
            vmem_limit_bytes=vmem_limit,
        ),
    )(idx, reps)

    r = out.reshape(num_blocks, 8, 128)
    return jnp.sum(r[:, 0, 0]), jnp.sum(r[:, 0, 1])


# --------------------- host-side sampling (as in the module) ------------------
# TODO(synk): np.random.choice sampling is host-side / data-dependent in the
# reference module (labels are .detach().cpu().numpy()), so it stays in NumPy.
def sample_terms(sl_lbs, sample_num=1):
    positive_id = np.argwhere(sl_lbs == 1).reshape(-1)
    negative_id = np.argwhere(sl_lbs == 0).reshape(-1)
    terms = []  # list of (anchor i, close_ids (C,), away id)
    for i in range(sl_lbs.shape[0]):
        lb_i = sl_lbs[i]
        if lb_i == 1:
            close_id = np.random.choice(positive_id.copy(), sample_num, replace=False)
            away_id = np.random.choice(negative_id, sample_num, replace=False)[close_id != i]
            close_id = close_id[close_id != i].reshape(away_id.shape)
        elif lb_i == 0:
            close_id = np.random.choice(negative_id.copy(), sample_num, replace=False)
            away_id = np.random.choice(positive_id, sample_num, replace=False)[close_id != i]
            close_id = close_id[close_id != i].reshape(away_id.shape)
        else:
            continue
        for aid in away_id:
            terms.append((int(i), close_id.copy().astype(np.int64), int(aid)))
    return terms


def build_term_indices(terms):
    """Pack terms into ONE sentinel-padded, lane-dense (t_pad, >=128) int32 tile.

    Column 0 = anchor id, column 1 = away id, columns 2..2+C = close ids.
    """
    t = len(terms)
    num_blocks = max(1, pl.cdiv(t, TBLK))
    t_pad = num_blocks * TBLK
    c_max = max([c.shape[0] for (_, c, _) in terms] or [1])
    idx_w = max(128, _round_up(2 + c_max, 128))
    idx = np.full((t_pad, idx_w), _SENTINEL, np.int32)
    for k, (i, close_ids, aid) in enumerate(terms):
        idx[k, 0] = i
        idx[k, 1] = aid
        idx[k, 2:2 + close_ids.shape[0]] = close_ids
    return idx, c_max


# ------------------------------- full forward ---------------------------------
def multi_view_cl_loss_from_terms(graph_rep, seq_rep, prediction_emb, terms,
                                  typ="sum", compute_dtype=jnp.bfloat16):
    idx, c_max = build_term_indices(terms)
    l2, l1 = _mvcl_device(jnp.asarray(idx), graph_rep, seq_rep, prediction_emb,
                          c_max=c_max, compute_dtype=compute_dtype)
    if typ == "sum":
        return l2, l1
    # TODO(synk): the reference forward only defines a return value for typ == 'sum'.
    return None


def multi_view_cl_loss(graph_rep, seq_rep, sl_lbs, typ="sum", lower_bound=-150.0,
                       sample_num=1, prediction_emb=None,
                       compute_dtype=jnp.bfloat16):
    """Signature-compatible wrapper (lower_bound unused, as in the reference)."""
    terms = sample_terms(np.asarray(sl_lbs), sample_num)
    return multi_view_cl_loss_from_terms(graph_rep, seq_rep, prediction_emb, terms,
                                         typ, compute_dtype)


# --------------------------- pure numpy reference -----------------------------
def ref_loss(graph_rep, seq_rep, pred, terms):
    def log_sig(x):
        return np.log(1.0 / (1.0 + np.exp(-np.maximum(x, -70.0))))

    l2, l1 = 0.0, 0.0
    for (i, close_ids, aid) in terms:
        c = close_ids.shape[0]
        g_i = np.tile(graph_rep[i], c)
        s_i = np.tile(seq_rep[i], c)
        p_i = np.tile(pred[i], c)
        g_close = graph_rep[close_ids].reshape(-1)
        s_close = seq_rep[close_ids].reshape(-1)
        p_close = pred[close_ids].reshape(-1)
        g_away = np.tile(graph_rep[aid], c)
        s_away = np.tile(seq_rep[aid], c)
        p_away = np.tile(pred[aid], c)
        loss_1 = log_sig(np.dot(g_i, s_close) - np.dot(g_i, s_away))
        loss_2 = log_sig(np.dot(s_i, g_close) - np.dot(s_i, g_away))
        l1 += log_sig(np.dot(p_i, p_close) - np.dot(p_i, p_away))
        l2 += loss_1 + loss_2
    return l2, l1


if __name__ == "__main__":
    N, D = 8, 32  # small shapes: batch=8, hidden=32
    key = jax.random.PRNGKey(0)
    k1, k2, k3 = jax.random.split(key, 3)
    graph_rep = jax.random.normal(k1, (N, D), jnp.float32)
    seq_rep = jax.random.normal(k2, (N, D), jnp.float32)
    prediction_emb = jax.random.normal(k3, (N, D), jnp.float32)
    sl_lbs = np.array([1, 1, 1, 1, 0, 0, 0, 0], dtype=np.int64)

    np.random.seed(0)  # deterministic sampling (sample_num=1, as in defaults)
    terms = sample_terms(sl_lbs, sample_num=1)

    ref2, ref1 = ref_loss(
        np.asarray(graph_rep, np.float64),
        np.asarray(seq_rep, np.float64),
        np.asarray(prediction_emb, np.float64),
        terms,
    )

    # 1) Bit-conservative path (f32 gather matmul): tight tolerance vs. reference.
    l2_f32, l1_f32 = multi_view_cl_loss_from_terms(
        graph_rep, seq_rep, prediction_emb, terms, typ="sum",
        compute_dtype=jnp.float32)
    jax.block_until_ready(l2_f32)
    jax.block_until_ready(l1_f32)
    assert np.allclose(float(l2_f32), ref2, rtol=1e-3, atol=1e-3), (float(l2_f32), ref2)
    assert np.allclose(float(l1_f32), ref1, rtol=1e-3, atol=1e-3), (float(l1_f32), ref1)

    # 2) Performance path (bf16 gather matmul, f32 accumulation): looser tolerance
    #    because gathered rep rows are rounded to bf16 (deliberate trade-off).
    l2_bf, l1_bf = multi_view_cl_loss_from_terms(
        graph_rep, seq_rep, prediction_emb, terms, typ="sum",
        compute_dtype=jnp.bfloat16)
    jax.block_until_ready(l2_bf)
    jax.block_until_ready(l1_bf)
    assert np.isfinite(float(l2_bf)) and np.isfinite(float(l1_bf))
    assert np.allclose(float(l2_bf), ref2, rtol=1e-1, atol=1.0), (float(l2_bf), ref2)
    assert np.allclose(float(l1_bf), ref1, rtol=1e-1, atol=1.0), (float(l1_bf), ref1)

    print("KERNEL_OK")
</pallas_src>

<mosaic_0001>
module attributes {stable_mosaic.version = 11 : i64} {
  func.func @_mvcl_kernel(%arg0: i32, %arg1: memref<128x128xi32, #tpu.memory_space<vmem>>, %arg2: memref<8x384xf32, #tpu.memory_space<vmem>>, %arg3: memref<8x128xf32, #tpu.memory_space<vmem>>) attributes {dimension_semantics = [#tpu.dimension_semantics<parallel>], iteration_bounds = array<i64: 1>, scalar_prefetch = 0 : i64, scratch_operands = 0 : i64, tpu.core_type = #tpu.core_type<tc>, window_params = [{transform_indices = @transform_0, window_bounds = array<i64: 128, 128>}, {pipeline_mode = #tpu.pipeline_mode<synchronous>, transform_indices = @transform_1, window_bounds = array<i64: 8, 384>}, {transform_indices = @transform_2, window_bounds = array<i64: 8, 128>}]} {
    %c0 = arith.constant 0 : index
    %c0_0 = arith.constant 0 : index
    %0 = vector.load %arg1[%c0, %c0_0] : memref<128x128xi32, #tpu.memory_space<vmem>>, vector<128x128xi32>
    %1 = vector.extract_strided_slice %0 {offsets = [0, 0], sizes = [128, 1], strides = [1, 1]} : vector<128x128xi32> to vector<128x1xi32>
    %2 = vector.extract_strided_slice %0 {offsets = [0, 1], sizes = [128, 1], strides = [1, 1]} : vector<128x128xi32> to vector<128x1xi32>
    %3 = tpu.iota {dimensions = array<i32: 1>} : vector<128x8xi32>
    %4 = vector.broadcast %1 : vector<128x1xi32> to vector<128x8xi32>
    %5 = arith.cmpi eq, %4, %3 : vector<128x8xi32>
    %6 = vector.broadcast %2 : vector<128x1xi32> to vector<128x8xi32>
    %7 = arith.cmpi eq, %6, %3 : vector<128x8xi32>
    %8 = vector.extract_strided_slice %0 {offsets = [0, 2], sizes = [128, 1], strides = [1, 1]} : vector<128x128xi32> to vector<128x1xi32>
    %c8_i32 = arith.constant 8 : i32
    %9 = vector.broadcast %c8_i32 : i32 to vector<128x1xi32>
    %10 = arith.cmpi slt, %8, %9 : vector<128x1xi32>
    %11 = arith.extui %10 : vector<128x1xi1> to vector<128x1xi32>
    %cst = arith.constant dense<0> : vector<128xi32>
    %12 = vector.multi_reduction <add>, %11, %cst [1] : vector<128x1xi32> to vector<128xi32>
    %13 = vector.shape_cast %12 : vector<128xi32> to vector<128x1xi32>
    %14 = arith.extui %7 : vector<128x8xi1> to vector<128x8xi32>
    %15 = vector.broadcast %13 : vector<128x1xi32> to vector<128x8xi32>
    %16 = arith.muli %15, %14 : vector<128x8xi32>
    %c0_i32 = arith.constant 0 : i32
    %17 = vector.broadcast %c0_i32 : i32 to vector<128x8xi32>
    %18 = arith.subi %17, %16 : vector<128x8xi32>
    %19 = vector.extract_strided_slice %0 {offsets = [0, 2], sizes = [128, 1], strides = [1, 1]} : vector<128x128xi32> to vector<128x1xi32>
    %20 = vector.broadcast %19 : vector<128x1xi32> to vector<128x8xi32>
    %21 = arith.cmpi eq, %20, %3 : vector<128x8xi32>
    %22 = arith.extui %21 : vector<128x8xi1> to vector<128x8xi32>
    %23 = arith.addi %18, %22 : vector<128x8xi32>
    %24 = arith.extui %5 : vector<128x8xi1> to vector<128x8xi32>
    %25 = arith.sitofp %24 : vector<128x8xi32> to vector<128x8xf32>
    %26 = arith.sitofp %23 : vector<128x8xi32> to vector<128x8xf32>
    %27 = tpu.concatenate %25, %26 in 0 : vector<128x8xf32>, vector<128x8xf32> -> vector<256x8xf32>
    %c0_1 = arith.constant 0 : index
    %c0_2 = arith.constant 0 : index
    %28 = vector.load %arg2[%c0_1, %c0_2] : memref<8x384xf32, #tpu.memory_space<vmem>>, vector<8x384xf32>
    %cst_3 = arith.constant dense<0.000000e+00> : vector<256x384xf32>
    %29 = tpu.matmul %27, %28, %cst_3 {dimension_numbers = #tpu.dot_dimension_numbers<[1], [0], [0], [1], [0, 0, 1, 1], [], []>} : vector<256x8xf32>, vector<8x384xf32>, vector<256x384xf32> -> vector<256x384xf32>
    %30 = vector.extract_strided_slice %29 {offsets = [0, 0], sizes = [128, 128], strides = [1, 1]} : vector<256x384xf32> to vector<128x128xf32>
    %31 = vector.extract_strided_slice %29 {offsets = [0, 128], sizes = [128, 128], strides = [1, 1]} : vector<256x384xf32> to vector<128x128xf32>
    %32 = vector.extract_strided_slice %29 {offsets = [0, 256], sizes = [128, 128], strides = [1, 1]} : vector<256x384xf32> to vector<128x128xf32>
    %33 = vector.extract_strided_slice %29 {offsets = [128, 0], sizes = [128, 128], strides = [1, 1]} : vector<256x384xf32> to vector<128x128xf32>
    %34 = vector.extract_strided_slice %29 {offsets = [128, 128], sizes = [128, 128], strides = [1, 1]} : vector<256x384xf32> to vector<128x128xf32>
    %35 = vector.extract_strided_slice %29 {offsets = [128, 256], sizes = [128, 128], strides = [1, 1]} : vector<256x384xf32> to vector<128x128xf32>
    %36 = arith.mulf %30, %34 : vector<128x128xf32>
    %cst_4 = arith.constant dense<0.000000e+00> : vector<128xf32>
    %37 = vector.multi_reduction <add>, %36, %cst_4 [1] : vector<128x128xf32> to vector<128xf32>
    %38 = vector.shape_cast %37 : vector<128xf32> to vector<128x1xf32>
    %39 = arith.mulf %31, %33 : vector<128x128xf32>
    %cst_5 = arith.constant dense<0.000000e+00> : vector<128xf32>
    %40 = vector.multi_reduction <add>, %39, %cst_5 [1] : vector<128x128xf32> to vector<128xf32>
    %41 = vector.shape_cast %40 : vector<128xf32> to vector<128x1xf32>
    %42 = arith.mulf %32, %35 : vector<128x128xf32>
    %cst_6 = arith.constant dense<0.000000e+00> : vector<128xf32>
    %43 = vector.multi_reduction <add>, %42, %cst_6 [1] : vector<128x128xf32> to vector<128xf32>
    %44 = vector.shape_cast %43 : vector<128xf32> to vector<128x1xf32>
    %c8_i32_7 = arith.constant 8 : i32
    %45 = vector.broadcast %c8_i32_7 : i32 to vector<128x1xi32>
    %46 = arith.cmpi slt, %1, %45 : vector<128x1xi32>
    %47 = arith.extui %46 : vector<128x1xi1> to vector<128x1xi32>
    %48 = arith.sitofp %47 : vector<128x1xi32> to vector<128x1xf32>
    %cst_8 = arith.constant -7.000000e+01 : f32
    %49 = vector.broadcast %cst_8 : f32 to vector<128x1xf32>
    %50 = arith.maximumf %38, %49 : vector<128x1xf32>
    %cst_9 = arith.constant 0.000000e+00 : f32
    %51 = vector.broadcast %cst_9 : f32 to vector<128x1xf32>
    %52 = arith.minimumf %50, %51 : vector<128x1xf32>
    %53 = math.absf %50 : vector<128x1xf32>
    %cst_10 = arith.constant 0.000000e+00 : f32
    %54 = vector.broadcast %cst_10 : f32 to vector<128x1xf32>
    %55 = arith.subf %54, %53 : vector<128x1xf32>
    %56 = math.exp %55 : vector<128x1xf32>
    %cst_11 = arith.constant 1.000000e+00 : f32
    %57 = vector.broadcast %cst_11 : f32 to vector<128x1xf32>
    %58 = arith.addf %57, %56 : vector<128x1xf32>
    %59 = math.log %58 : vector<128x1xf32>
    %60 = arith.subf %52, %59 : vector<128x1xf32>
    %cst_12 = arith.constant -7.000000e+01 : f32
    %61 = vector.broadcast %cst_12 : f32 to vector<128x1xf32>
    %62 = arith.maximumf %41, %61 : vector<128x1xf32>
    %cst_13 = arith.constant 0.000000e+00 : f32
    %63 = vector.broadcast %cst_13 : f32 to vector<128x1xf32>
    %64 = arith.minimumf %62, %63 : vector<128x1xf32>
    %65 = math.absf %62 : vector<128x1xf32>
    %cst_14 = arith.constant 0.000000e+00 : f32
    %66 = vector.broadcast %cst_14 : f32 to vector<128x1xf32>
    %67 = arith.subf %66, %65 : vector<128x1xf32>
    %68 = math.exp %67 : vector<128x1xf32>
    %cst_15 = arith.constant 1.000000e+00 : f32
    %69 = vector.broadcast %cst_15 : f32 to vector<128x1xf32>
    %70 = arith.addf %69, %68 : vector<128x1xf32>
    %71 = math.log %70 : vector<128x1xf32>
    %72 = arith.subf %64, %71 : vector<128x1xf32>
    %73 = arith.addf %60, %72 : vector<128x1xf32>
    %74 = arith.mulf %48, %73 : vector<128x1xf32>
    %75 = vector.shape_cast %74 : vector<128x1xf32> to vector<1x128x1xf32>
    %cst_16 = arith.constant dense<0.000000e+00> : vector<1xf32>
    %76 = vector.multi_reduction <add>, %75, %cst_16 [1, 2] : vector<1x128x1xf32> to vector<1xf32>
    %77 = vector.shape_cast %76 : vector<1xf32> to vector<1x1x1xf32>
    %78 = vector.extract %77[0, 0, 0] : f32 from vector<1x1x1xf32>
    %cst_17 = arith.constant -7.000000e+01 : f32
    %79 = vector.broadcast %cst_17 : f32 to vector<128x1xf32>
    %80 = arith.maximumf %44, %79 : vector<128x1xf32>
    %cst_18 = arith.constant 0.000000e+00 : f32
    %81 = vector.broadcast %cst_18 : f32 to vector<128x1xf32>
    %82 = arith.minimumf %80, %81 : vector<128x1xf32>
    %83 = math.absf %80 : vector<128x1xf32>
    %cst_19 = arith.constant 0.000000e+00 : f32
    %84 = vector.broadcast %cst_19 : f32 to vector<128x1xf32>
    %85 = arith.subf %84, %83 : vector<128x1xf32>
    %86 = math.exp %85 : vector<128x1xf32>
    %cst_20 = arith.constant 1.000000e+00 : f32
    %87 = vector.broadcast %cst_20 : f32 to vector<128x1xf32>
    %88 = arith.addf %87, %86 : vector<128x1xf32>
    %89 = math.log %88 : vector<128x1xf32>
    %90 = arith.subf %82, %89 : vector<128x1xf32>
    %91 = arith.mulf %48, %90 : vector<128x1xf32>
    %92 = vector.shape_cast %91 : vector<128x1xf32> to vector<1x128x1xf32>
    %cst_21 = arith.constant dense<0.000000e+00> : vector<1xf32>
    %93 = vector.multi_reduction <add>, %92, %cst_21 [1, 2] : vector<1x128x1xf32> to vector<1xf32>
    %94 = vector.shape_cast %93 : vector<1xf32> to vector<1x1x1xf32>
    %95 = vector.extract %94[0, 0, 0] : f32 from vector<1x1x1xf32>
    %96 = tpu.iota {dimensions = array<i32: 0>} : vector<8x128xi32>
    %97 = tpu.iota {dimensions = array<i32: 1>} : vector<8x128xi32>
    %c0_i32_22 = arith.constant 0 : i32
    %98 = vector.broadcast %c0_i32_22 : i32 to vector<8x128xi32>
    %99 = arith.cmpi eq, %96, %98 : vector<8x128xi32>
    %c0_i32_23 = arith.constant 0 : i32
    %100 = vector.broadcast %c0_i32_23 : i32 to vector<8x128xi32>
    %101 = arith.cmpi eq, %97, %100 : vector<8x128xi32>
    %102 = arith.andi %99, %101 : vector<8x128xi1>
    %c0_i32_24 = arith.constant 0 : i32
    %103 = vector.broadcast %c0_i32_24 : i32 to vector<8x128xi32>
    %104 = arith.cmpi eq, %96, %103 : vector<8x128xi32>
    %c1_i32 = arith.constant 1 : i32
    %105 = vector.broadcast %c1_i32 : i32 to vector<8x128xi32>
    %106 = arith.cmpi eq, %97, %105 : vector<8x128xi32>
    %107 = arith.andi %104, %106 : vector<8x128xi1>
    %cst_25 = arith.constant 0.000000e+00 : f32
    %108 = vector.broadcast %95 : f32 to vector<8x128xf32>
    %109 = vector.broadcast %cst_25 : f32 to vector<8x128xf32>
    %110 = arith.select %107, %108, %109 : vector<8x128xi1>, vector<8x128xf32>
    %111 = vector.broadcast %78 : f32 to vector<8x128xf32>
    %112 = arith.select %102, %111, %110 : vector<8x128xi1>, vector<8x128xf32>
    %c0_26 = arith.constant 0 : index
    %c0_27 = arith.constant 0 : index
    %113 = vector.load %arg3[%c0_26, %c0_27] : memref<8x128xf32, #tpu.memory_space<vmem>>, vector<8x128xf32>
    tpu.vector_store %arg3[%c0_26, %c0_27], %112 {strides = array<i32>} : memref<8x128xf32, #tpu.memory_space<vmem>>, vector<8x128xf32>,
    return
  }
  func.func @transform_0(%arg0: i32) -> (i32, i32) {
    %c0_i32 = arith.constant 0 : i32
    %c0_i32_0 = arith.constant 0 : i32
    return %arg0, %c0_i32 : i32, i32
  }
  func.func @transform_1(%arg0: i32) -> (i32, i32) {
    %c0_i32 = arith.constant 0 : i32
    %c0_i32_0 = arith.constant 0 : i32
    %c0_i32_1 = arith.constant 0 : i32
    return %c0_i32, %c0_i32_0 : i32, i32
  }
  func.func @transform_2(%arg0: i32) -> (i32, i32) {
    %c0_i32 = arith.constant 0 : i32
    %c0_i32_0 = arith.constant 0 : i32
    return %arg0, %c0_i32 : i32, i32
  }
}

</mosaic_0001>

<llo_original>
// kernel: _mvcl_device.1
$region0: #{_mvcl_device.1}
  #allocation0 [shape = 'u32[]', space=smem, size = 0x4, offset = 0x4, fixed_abs, tag = 'smem constant byte address 0x4 - core index']
  #allocation1 [shape = 'u32[144,128]{1,0:T(1,128)}', space=vmem, size = 0x12000, scoped, tag = 'internal scratch']
  %s0 = inlined_call_operand.hbm [shape: s32[128,128], index: 0, kind: input, shape index: {}]
  %s1 = inlined_call_operand.vmem [shape: f32[8,384], index: 1, kind: input, shape index: {}]
  %s2 = inlined_call_operand.vmem [shape: f32[8,128], index: 2, kind: output, shape index: {}]
  %s3 = sld [smem:[#allocation0]]
  $region22: #{_mvcl_device.1} parent=0
    _
  %s5 = ssub.s32 1, %s3
  %s6 = scalar_select 0, %s5, %s3
  $region1: #{_mvcl_device.1} parent=0
    #allocation2 [shape = 'u8[65536]{0}', space=vmem, size = 0x10000, scoped, tag = 'input window, operand 0, single buffered']
    #allocation3 [shape = 's32[1]{0}', space=sflag, size = 0x4, scoped, tag = 'scoped memory for _mvcl_device.1']
    %7 = vsyncpa [#allocation3], 0
    // Predicated region
    $region2: #{_mvcl_device.1} parent=1 // pred_check
      _
    $region3: #{_mvcl_device.1} parent=1 // pred_check_branch
      %9 = sbr.rel (0) target = $region5
    $region4: #{_mvcl_device.1} parent=1 // pred_region
      %s11 = ssub.s32 2048, 2048
      %12 = vsyncadd [#allocation3], %s11
      %s13 = sshll.u32 [#allocation2], 4
      %s14 = int_to_ptr.vmem [resolvable:$true] %s13
      %19 = dma.hbm_to_vmem [thread:$0]  %s0, 2048, %s14, [#allocation3], 128, 128, 8
    $region5: #{_mvcl_device.1} parent=1 // pred_fallthru
      _
    // Predicated region
    $region6: #{_mvcl_device.1} parent=1 // pred_check
      _
    $region7: #{_mvcl_device.1} parent=1 // pred_check_branch
      %21 = sbr.rel (0) target = $region9
    $region8: #{_mvcl_device.1} parent=1 // pred_region
      _
    $region9: #{_mvcl_device.1} parent=1 // pred_fallthru
      _
    // Predicated region
    $region10: #{_mvcl_device.1} parent=1 // pred_check
      _
    $region11: #{_mvcl_device.1} parent=1 // pred_check_branch
      %23 = sbr.rel (0) target = $region13
    $region12: #{_mvcl_device.1} parent=1 // pred_region
      %24 = dma.done [#allocation3], 2048
    $region13: #{_mvcl_device.1} parent=1 // pred_fallthru
      _
    %v25 = vld [vmem:[#allocation2] sm:$0xff]
    %v26 = vld [vmem:[#allocation2 + $0x8] sm:$0xff]
    %v27 = vld [vmem:[#allocation2 + $0x10] sm:$0xff]
    %v28 = vld [vmem:[#allocation2 + $0x18] sm:$0xff]
    %v29 = vld [vmem:[#allocation2 + $0x20] sm:$0xff]
    %v30 = vld [vmem:[#allocation2 + $0x28] sm:$0xff]
    %v31 = vld [vmem:[#allocation2 + $0x30] sm:$0xff]
    %v32 = vld [vmem:[#allocation2 + $0x38] sm:$0xff]
    %v33 = vld [vmem:[#allocation2 + $0x40] sm:$0xff]
    %v34 = vld [vmem:[#allocation2 + $0x48] sm:$0xff]
    %v35 = vld [vmem:[#allocation2 + $0x50] sm:$0xff]
    %v36 = vld [vmem:[#allocation2 + $0x58] sm:$0xff]
    %v37 = vld [vmem:[#allocation2 + $0x60] sm:$0xff]
    %v38 = vld [vmem:[#allocation2 + $0x68] sm:$0xff]
    %v39 = vld [vmem:[#allocation2 + $0x70] sm:$0xff]
    %v40 = vld [vmem:[#allocation2 + $0x78] sm:$0xff]
    %v41 = vlaneseq
    %v42 = vand.u32 %v41, 127
    %43 = vset.pattern.permute.xlu0 0
    %44 = vperm.xlu0 %43, %v25
    %v45 = vpop.permute.xlu0 %44
    %46 = vset.pattern.permute.xlu0 0
    %47 = vperm.xlu0 %46, %v26
    %v48 = vpop.permute.xlu0 %47
    %49 = vset.pattern.permute.xlu0 0
    %50 = vperm.xlu0 %49, %v27
    %v51 = vpop.permute.xlu0 %50
    %52 = vset.pattern.permute.xlu0 0
    %53 = vperm.xlu0 %52, %v28
    %v54 = vpop.permute.xlu0 %53
    %55 = vset.pattern.permute.xlu0 0
    %56 = vperm.xlu0 %55, %v29
    %v57 = vpop.permute.xlu0 %56
    %58 = vset.pattern.permute.xlu0 0
    %59 = vperm.xlu0 %58, %v30
    %v60 = vpop.permute.xlu0 %59
    %61 = vset.pattern.permute.xlu0 0
    %62 = vperm.xlu0 %61, %v31
    %v63 = vpop.permute.xlu0 %62
    %64 = vset.pattern.permute.xlu0 0
    %65 = vperm.xlu0 %64, %v32
    %v66 = vpop.permute.xlu0 %65
    %67 = vset.pattern.permute.xlu0 0
    %68 = vperm.xlu0 %67, %v33
    %v69 = vpop.permute.xlu0 %68
    %70 = vset.pattern.permute.xlu0 0
    %71 = vperm.xlu0 %70, %v34
    %v72 = vpop.permute.xlu0 %71
    %73 = vset.pattern.permute.xlu0 0
    %74 = vperm.xlu0 %73, %v35
    %v75 = vpop.permute.xlu0 %74
    %76 = vset.pattern.permute.xlu0 0
    %77 = vperm.xlu0 %76, %v36
    %v78 = vpop.permute.xlu0 %77
    %79 = vset.pattern.permute.xlu0 0
    %80 = vperm.xlu0 %79, %v37
    %v81 = vpop.permute.xlu0 %80
    %82 = vset.pattern.permute.xlu0 0
    %83 = vperm.xlu0 %82, %v38
    %v84 = vpop.permute.xlu0 %83
    %85 = vset.pattern.permute.xlu0 0
    %86 = vperm.xlu0 %85, %v39
    %v87 = vpop.permute.xlu0 %86
    %88 = vset.pattern.permute.xlu0 0
    %89 = vperm.xlu0 %88, %v40
    %v90 = vpop.permute.xlu0 %89
    %vm91 = vcmp.eq.s32.totalorder %v45, %v42
    %vm92 = vcmp.eq.s32.totalorder %v48, %v42
    %vm93 = vcmp.eq.s32.totalorder %v51, %v42
    %vm94 = vcmp.eq.s32.totalorder %v54, %v42
    %vm95 = vcmp.eq.s32.totalorder %v57, %v42
    %vm96 = vcmp.eq.s32.totalorder %v60, %v42
    %vm97 = vcmp.eq.s32.totalorder %v63, %v42
    %vm98 = vcmp.eq.s32.totalorder %v66, %v42
    %vm99 = vcmp.eq.s32.totalorder %v69, %v42
    %vm100 = vcmp.eq.s32.totalorder %v72, %v42
    %vm101 = vcmp.eq.s32.totalorder %v75, %v42
    %vm102 = vcmp.eq.s32.totalorder %v78, %v42
    %vm103 = vcmp.eq.s32.totalorder %v81, %v42
    %vm104 = vcmp.eq.s32.totalorder %v84, %v42
    %vm105 = vcmp.eq.s32.totalorder %v87, %v42
    %vm106 = vcmp.eq.s32.totalorder %v90, %v42
    %107 = vset.pattern.permute.xlu0 1
    %108 = vperm.xlu0 %107, %v25
    %v109 = vpop.permute.xlu0 %108
    %110 = vset.pattern.permute.xlu0 1
    %111 = vperm.xlu0 %110, %v26
    %v112 = vpop.permute.xlu0 %111
    %113 = vset.pattern.permute.xlu0 1
    %114 = vperm.xlu0 %113, %v27
    %v115 = vpop.permute.xlu0 %114
    %116 = vset.pattern.permute.xlu0 1
    %117 = vperm.xlu0 %116, %v28
    %v118 = vpop.permute.xlu0 %117
    %119 = vset.pattern.permute.xlu0 1
    %120 = vperm.xlu0 %119, %v29
    %v121 = vpop.permute.xlu0 %120
    %122 = vset.pattern.permute.xlu0 1
    %123 = vperm.xlu0 %122, %v30
    %v124 = vpop.permute.xlu0 %123
    %125 = vset.pattern.permute.xlu0 1
    %126 = vperm.xlu0 %125, %v31
    %v127 = vpop.permute.xlu0 %126
    %128 = vset.pattern.permute.xlu0 1
    %129 = vperm.xlu0 %128, %v32
    %v130 = vpop.permute.xlu0 %129
    %131 = vset.pattern.permute.xlu0 1
    %132 = vperm.xlu0 %131, %v33
    %v133 = vpop.permute.xlu0 %132
    %134 = vset.pattern.permute.xlu0 1
    %135 = vperm.xlu0 %134, %v34
    %v136 = vpop.permute.xlu0 %135
    %137 = vset.pattern.permute.xlu0 1
    %138 = vperm.xlu0 %137, %v35
    %v139 = vpop.permute.xlu0 %138
    %140 = vset.pattern.permute.xlu0 1
    %141 = vperm.xlu0 %140, %v36
    %v142 = vpop.permute.xlu0 %141
    %143 = vset.pattern.permute.xlu0 1
    %144 = vperm.xlu0 %143, %v37
    %v145 = vpop.permute.xlu0 %144
    %146 = vset.pattern.permute.xlu0 1
    %147 = vperm.xlu0 %146, %v38
    %v148 = vpop.permute.xlu0 %147
    %149 = vset.pattern.permute.xlu0 1
    %150 = vperm.xlu0 %149, %v39
    %v151 = vpop.permute.xlu0 %150
    %152 = vset.pattern.permute.xlu0 1
    %153 = vperm.xlu0 %152, %v40
    %v154 = vpop.permute.xlu0 %153
    %vm155 = vcmp.eq.s32.totalorder %v109, %v42
    %vm156 = vcmp.eq.s32.totalorder %v112, %v42
    %vm157 = vcmp.eq.s32.totalorder %v115, %v42
    %vm158 = vcmp.eq.s32.totalorder %v118, %v42
    %vm159 = vcmp.eq.s32.totalorder %v121, %v42
    %vm160 = vcmp.eq.s32.totalorder %v124, %v42
    %vm161 = vcmp.eq.s32.totalorder %v127, %v42
    %vm162 = vcmp.eq.s32.totalorder %v130, %v42
    %vm163 = vcmp.eq.s32.totalorder %v133, %v42
    %vm164 = vcmp.eq.s32.totalorder %v136, %v42
    %vm165 = vcmp.eq.s32.totalorder %v139, %v42
    %vm166 = vcmp.eq.s32.totalorder %v142, %v42
    %vm167 = vcmp.eq.s32.totalorder %v145, %v42
    %vm168 = vcmp.eq.s32.totalorder %v148, %v42
    %vm169 = vcmp.eq.s32.totalorder %v151, %v42
    %vm170 = vcmp.eq.s32.totalorder %v154, %v42
    %vm171 = vcmp.lt.s32.totalorder %v25, 8
    %vm172 = vcmp.lt.s32.totalorder %v26, 8
    %vm173 = vcmp.lt.s32.totalorder %v27, 8
    %vm174 = vcmp.lt.s32.totalorder %v28, 8
    %vm175 = vcmp.lt.s32.totalorder %v29, 8
    %vm176 = vcmp.lt.s32.totalorder %v30, 8
    %vm177 = vcmp.lt.s32.totalorder %v31, 8
    %vm178 = vcmp.lt.s32.totalorder %v32, 8
    %vm179 = vcmp.lt.s32.totalorder %v33, 8
    %vm180 = vcmp.lt.s32.totalorder %v34, 8
    %vm181 = vcmp.lt.s32.totalorder %v35, 8
    %vm182 = vcmp.lt.s32.totalorder %v36, 8
    %vm183 = vcmp.lt.s32.totalorder %v37, 8
    %vm184 = vcmp.lt.s32.totalorder %v38, 8
    %vm185 = vcmp.lt.s32.totalorder %v39, 8
    %vm186 = vcmp.lt.s32.totalorder %v40, 8
    %v187 = vsel %vm171, 1, 0
    %v188 = vsel %vm172, 1, 0
    %v189 = vsel %vm173, 1, 0
    %v190 = vsel %vm174, 1, 0
    %v191 = vsel %vm175, 1, 0
    %v192 = vsel %vm176, 1, 0
    %v193 = vsel %vm177, 1, 0
    %v194 = vsel %vm178, 1, 0
    %v195 = vsel %vm179, 1, 0
    %v196 = vsel %vm180, 1, 0
    %v197 = vsel %vm181, 1, 0
    %v198 = vsel %vm182, 1, 0
    %v199 = vsel %vm183, 1, 0
    %v200 = vsel %vm184, 1, 0
    %v201 = vsel %vm185, 1, 0
    %v202 = vsel %vm186, 1, 0
    %v203 = vsel %vm155, 1, 0
    %v204 = vsel %vm156, 1, 0
    %v205 = vsel %vm157, 1, 0
    %v206 = vsel %vm158, 1, 0
    %v207 = vsel %vm159, 1, 0
    %v208 = vsel %vm160, 1, 0
    %v209 = vsel %vm161, 1, 0
    %v210 = vsel %vm162, 1, 0
    %v211 = vsel %vm163, 1, 0
    %v212 = vsel %vm164, 1, 0
    %v213 = vsel %vm165, 1, 0
    %v214 = vsel %vm166, 1, 0
    %v215 = vsel %vm167, 1, 0
    %v216 = vsel %vm168, 1, 0
    %v217 = vsel %vm169, 1, 0
    %v218 = vsel %vm170, 1, 0
    %219 = vset.pattern.permute.xlu0 2
    %220 = vperm.xlu0 %219, %v187
    %v221 = vpop.permute.xlu0 %220
    %222 = vset.pattern.permute.xlu0 2
    %223 = vperm.xlu0 %222, %v188
    %v224 = vpop.permute.xlu0 %223
    %225 = vset.pattern.permute.xlu0 2
    %226 = vperm.xlu0 %225, %v189
    %v227 = vpop.permute.xlu0 %226
    %228 = vset.pattern.permute.xlu0 2
    %229 = vperm.xlu0 %228, %v190
    %v230 = vpop.permute.xlu0 %229
    %231 = vset.pattern.permute.xlu0 2
    %232 = vperm.xlu0 %231, %v191
    %v233 = vpop.permute.xlu0 %232
    %234 = vset.pattern.permute.xlu0 2
    %235 = vperm.xlu0 %234, %v192
    %v236 = vpop.permute.xlu0 %235
    %237 = vset.pattern.permute.xlu0 2
    %238 = vperm.xlu0 %237, %v193
    %v239 = vpop.permute.xlu0 %238
    %240 = vset.pattern.permute.xlu0 2
    %241 = vperm.xlu0 %240, %v194
    %v242 = vpop.permute.xlu0 %241
    %243 = vset.pattern.permute.xlu0 2
    %244 = vperm.xlu0 %243, %v195
    %v245 = vpop.permute.xlu0 %244
    %246 = vset.pattern.permute.xlu0 2
    %247 = vperm.xlu0 %246, %v196
    %v248 = vpop.permute.xlu0 %247
    %249 = vset.pattern.permute.xlu0 2
    %250 = vperm.xlu0 %249, %v197
    %v251 = vpop.permute.xlu0 %250
    %252 = vset.pattern.permute.xlu0 2
    %253 = vperm.xlu0 %252, %v198
    %v254 = vpop.permute.xlu0 %253
    %255 = vset.pattern.permute.xlu0 2
    %256 = vperm.xlu0 %255, %v199
    %v257 = vpop.permute.xlu0 %256
    %258 = vset.pattern.permute.xlu0 2
    %259 = vperm.xlu0 %258, %v200
    %v260 = vpop.permute.xlu0 %259
    %261 = vset.pattern.permute.xlu0 2
    %262 = vperm.xlu0 %261, %v201
    %v263 = vpop.permute.xlu0 %262
    %264 = vset.pattern.permute.xlu0 2
    %265 = vperm.xlu0 %264, %v202
    %v266 = vpop.permute.xlu0 %265
    %v267 = vmul.u32 %v221, %v203
    %v268 = vmul.u32 %v224, %v204
    %v269 = vmul.u32 %v227, %v205
    %v270 = vmul.u32 %v230, %v206
    %v271 = vmul.u32 %v233, %v207
    %v272 = vmul.u32 %v236, %v208
    %v273 = vmul.u32 %v239, %v209
    %v274 = vmul.u32 %v242, %v210
    %v275 = vmul.u32 %v245, %v211
    %v276 = vmul.u32 %v248, %v212
    %v277 = vmul.u32 %v251, %v213
    %v278 = vmul.u32 %v254, %v214
    %v279 = vmul.u32 %v257, %v215
    %v280 = vmul.u32 %v260, %v216
    %v281 = vmul.u32 %v263, %v217
    %v282 = vmul.u32 %v266, %v218
    %v283 = vsub.s32 0, %v267
    %v284 = vsub.s32 0, %v268
    %v285 = vsub.s32 0, %v269
    %v286 = vsub.s32 0, %v270
    %v287 = vsub.s32 0, %v271
    %v288 = vsub.s32 0, %v272
    %v289 = vsub.s32 0, %v273
    %v290 = vsub.s32 0, %v274
    %v291 = vsub.s32 0, %v275
    %v292 = vsub.s32 0, %v276
    %v293 = vsub.s32 0, %v277
    %v294 = vsub.s32 0, %v278
    %v295 = vsub.s32 0, %v279
    %v296 = vsub.s32 0, %v280
    %v297 = vsub.s32 0, %v281
    %v298 = vsub.s32 0, %v282
    %299 = vset.pattern.permute.xlu0 2
    %300 = vperm.xlu0 %299, %v25
    %v301 = vpop.permute.xlu0 %300
    %302 = vset.pattern.permute.xlu0 2
    %303 = vperm.xlu0 %302, %v26
    %v304 = vpop.permute.xlu0 %303
    %305 = vset.pattern.permute.xlu0 2
    %306 = vperm.xlu0 %305, %v27
    %v307 = vpop.permute.xlu0 %306
    %308 = vset.pattern.permute.xlu0 2
    %309 = vperm.xlu0 %308, %v28
    %v310 = vpop.permute.xlu0 %309
    %311 = vset.pattern.permute.xlu0 2
    %312 = vperm.xlu0 %311, %v29
    %v313 = vpop.permute.xlu0 %312
    %314 = vset.pattern.permute.xlu0 2
    %315 = vperm.xlu0 %314, %v30
    %v316 = vpop.permute.xlu0 %315
    %317 = vset.pattern.permute.xlu0 2
    %318 = vperm.xlu0 %317, %v31
    %v319 = vpop.permute.xlu0 %318
    %320 = vset.pattern.permute.xlu0 2
    %321 = vperm.xlu0 %320, %v32
    %v322 = vpop.permute.xlu0 %321
    %323 = vset.pattern.permute.xlu0 2
    %324 = vperm.xlu0 %323, %v33
    %v325 = vpop.permute.xlu0 %324
    %326 = vset.pattern.permute.xlu0 2
    %327 = vperm.xlu0 %326, %v34
    %v328 = vpop.permute.xlu0 %327
    %329 = vset.pattern.permute.xlu0 2
    %330 = vperm.xlu0 %329, %v35
    %v331 = vpop.permute.xlu0 %330
    %332 = vset.pattern.permute.xlu0 2
    %333 = vperm.xlu0 %332, %v36
    %v334 = vpop.permute.xlu0 %333
    %335 = vset.pattern.permute.xlu0 2
    %336 = vperm.xlu0 %335, %v37
    %v337 = vpop.permute.xlu0 %336
    %338 = vset.pattern.permute.xlu0 2
    %339 = vperm.xlu0 %338, %v38
    %v340 = vpop.permute.xlu0 %339
    %341 = vset.pattern.permute.xlu0 2
    %342 = vperm.xlu0 %341, %v39
    %v343 = vpop.permute.xlu0 %342
    %344 = vset.pattern.permute.xlu0 2
    %345 = vperm.xlu0 %344, %v40
    %v346 = vpop.permute.xlu0 %345
    %vm347 = vcmp.eq.s32.totalorder %v301, %v42
    %vm348 = vcmp.eq.s32.totalorder %v304, %v42
    %vm349 = vcmp.eq.s32.totalorder %v307, %v42
    %vm350 = vcmp.eq.s32.totalorder %v310, %v42
    %vm351 = vcmp.eq.s32.totalorder %v313, %v42
    %vm352 = vcmp.eq.s32.totalorder %v316, %v42
    %vm353 = vcmp.eq.s32.totalorder %v319, %v42
    %vm354 = vcmp.eq.s32.totalorder %v322, %v42
    %vm355 = vcmp.eq.s32.totalorder %v325, %v42
    %vm356 = vcmp.eq.s32.totalorder %v328, %v42
    %vm357 = vcmp.eq.s32.totalorder %v331, %v42
    %vm358 = vcmp.eq.s32.totalorder %v334, %v42
    %vm359 = vcmp.eq.s32.totalorder %v337, %v42
    %vm360 = vcmp.eq.s32.totalorder %v340, %v42
    %vm361 = vcmp.eq.s32.totalorder %v343, %v42
    %vm362 = vcmp.eq.s32.totalorder %v346, %v42
    %v363 = vsel %vm347, 1, 0
    %v364 = vsel %vm348, 1, 0
    %v365 = vsel %vm349, 1, 0
    %v366 = vsel %vm350, 1, 0
    %v367 = vsel %vm351, 1, 0
    %v368 = vsel %vm352, 1, 0
    %v369 = vsel %vm353, 1, 0
    %v370 = vsel %vm354, 1, 0
    %v371 = vsel %vm355, 1, 0
    %v372 = vsel %vm356, 1, 0
    %v373 = vsel %vm357, 1, 0
    %v374 = vsel %vm358, 1, 0
    %v375 = vsel %vm359, 1, 0
    %v376 = vsel %vm360, 1, 0
    %v377 = vsel %vm361, 1, 0
    %v378 = vsel %vm362, 1, 0
    %v379 = vadd.s32 %v283, %v363
    %v380 = vadd.s32 %v284, %v364
    %v381 = vadd.s32 %v285, %v365
    %v382 = vadd.s32 %v286, %v366
    %v383 = vadd.s32 %v287, %v367
    %v384 = vadd.s32 %v288, %v368
    %v385 = vadd.s32 %v289, %v369
    %v386 = vadd.s32 %v290, %v370
    %v387 = vadd.s32 %v291, %v371
    %v388 = vadd.s32 %v292, %v372
    %v389 = vadd.s32 %v293, %v373
    %v390 = vadd.s32 %v294, %v374
    %v391 = vadd.s32 %v295, %v375
    %v392 = vadd.s32 %v296, %v376
    %v393 = vadd.s32 %v297, %v377
    %v394 = vadd.s32 %v298, %v378
    %v395 = vsel %vm91, 1, 0
    %v396 = vsel %vm92, 1, 0
    %v397 = vsel %vm93, 1, 0
    %v398 = vsel %vm94, 1, 0
    %v399 = vsel %vm95, 1, 0
    %v400 = vsel %vm96, 1, 0
    %v401 = vsel %vm97, 1, 0
    %v402 = vsel %vm98, 1, 0
    %v403 = vsel %vm99, 1, 0
    %v404 = vsel %vm100, 1, 0
    %v405 = vsel %vm101, 1, 0
    %v406 = vsel %vm102, 1, 0
    %v407 = vsel %vm103, 1, 0
    %v408 = vsel %vm104, 1, 0
    %v409 = vsel %vm105, 1, 0
    %v410 = vsel %vm106, 1, 0
    %v411 = vcvt.s32.f32 %v395
    %v412 = vcvt.s32.f32 %v396
    %v413 = vcvt.s32.f32 %v397
    %v414 = vcvt.s32.f32 %v398
    %v415 = vcvt.s32.f32 %v399
    %v416 = vcvt.s32.f32 %v400
    %v417 = vcvt.s32.f32 %v401
    %v418 = vcvt.s32.f32 %v402
    %v419 = vcvt.s32.f32 %v403
    %v420 = vcvt.s32.f32 %v404
    %v421 = vcvt.s32.f32 %v405
    %v422 = vcvt.s32.f32 %v406
    %v423 = vcvt.s32.f32 %v407
    %v424 = vcvt.s32.f32 %v408
    %v425 = vcvt.s32.f32 %v409
    %v426 = vcvt.s32.f32 %v410
    %v427 = vcvt.s32.f32 %v379
    %v428 = vcvt.s32.f32 %v380
    %v429 = vcvt.s32.f32 %v381
    %v430 = vcvt.s32.f32 %v382
    %v431 = vcvt.s32.f32 %v383
    %v432 = vcvt.s32.f32 %v384
    %v433 = vcvt.s32.f32 %v385
    %v434 = vcvt.s32.f32 %v386
    %v435 = vcvt.s32.f32 %v387
    %v436 = vcvt.s32.f32 %v388
    %v437 = vcvt.s32.f32 %v389
    %v438 = vcvt.s32.f32 %v390
    %v439 = vcvt.s32.f32 %v391
    %v440 = vcvt.s32.f32 %v392
    %v441 = vcvt.s32.f32 %v393
    %v442 = vcvt.s32.f32 %v394
    %v443 = vld [vmem:[%s1] sm:$0xff]
    %v444 = vld [vmem:[%s1 + $0x8] sm:$0xff]
    %v445 = vld [vmem:[%s1 + $0x10] sm:$0xff]
    %vm446 = vcmask 64512
    %v448 = vsel %vm446, %v411, 0
    %v451 = vsel %vm446, %v412, 0
    %v454 = vsel %vm446, %v413, 0
    %v457 = vsel %vm446, %v414, 0
    %v460 = vsel %vm446, %v415, 0
    %v463 = vsel %vm446, %v416, 0
    %v466 = vsel %vm446, %v417, 0
    %v469 = vsel %vm446, %v418, 0
    %v472 = vsel %vm446, %v419, 0
    %v475 = vsel %vm446, %v420, 0
    %v478 = vsel %vm446, %v421, 0
    %v481 = vsel %vm446, %v422, 0
    %v484 = vsel %vm446, %v423, 0
    %v487 = vsel %vm446, %v424, 0
    %v490 = vsel %vm446, %v425, 0
    %v493 = vsel %vm446, %v426, 0
    %v496 = vsel %vm446, %v427, 0
    %v499 = vsel %vm446, %v428, 0
    %v502 = vsel %vm446, %v429, 0
    %v505 = vsel %vm446, %v430, 0
    %v508 = vsel %vm446, %v431, 0
    %v511 = vsel %vm446, %v432, 0
    %v514 = vsel %vm446, %v433, 0
    %v517 = vsel %vm446, %v434, 0
    %v520 = vsel %vm446, %v435, 0
    %v523 = vsel %vm446, %v436, 0
    %v526 = vsel %vm446, %v437, 0
    %v529 = vsel %vm446, %v438, 0
    %v532 = vsel %vm446, %v439, 0
    %v535 = vsel %vm446, %v440, 0
    %v538 = vsel %vm446, %v441, 0
    %v541 = vsel %vm446, %v442, 0
    %543 = vmatprep.subr.mxu0 %v444
    %544 = vmatpush1.msra.mxu0 %v443
    %545 = vmatprep.subr.mxu0 0.0
    %546 = vmatpush1.msra.mxu0 0.0
    %547 = vmatprep.subr.mxu0 0.0
    %548 = vmatpush1.msra.mxu0 0.0
    %549 = vmatprep.subr.mxu0 0.0
    %550 = vmatpush1.msra.mxu0 0.0
    %551 = vmatprep.subr.mxu0 0.0
    %552 = vmatpush1.msra.mxu0 0.0
    %553 = vmatprep.subr.mxu0 0.0
    %554 = vmatpush1.msra.mxu0 0.0
    %555 = vmatprep.subr.mxu0 0.0
    %556 = vmatpush1.msra.mxu0 0.0
    %557 = vmatprep.subr.mxu0 0.0
    %558 = vmatpush1.msra.mxu0 0.0
    %559 = vmatprep.subr.mxu0 0.0
    %560 = vmatpush1.msra.mxu0 0.0
    %561 = vmatprep.subr.mxu0 0.0
    %562 = vmatpush1.msra.mxu0 0.0
    %563 = vmatprep.subr.mxu0 0.0
    %564 = vmatpush1.msra.mxu0 0.0
    %565 = vmatprep.subr.mxu0 0.0
    %566 = vmatpush1.msra.mxu0 0.0
    %567 = vmatprep.subr.mxu0 0.0
    %568 = vmatpush1.msra.mxu0 0.0
    %569 = vmatprep.subr.mxu0 0.0
    %570 = vmatpush1.msra.mxu0 0.0
    %571 = vmatprep.subr.mxu0 0.0
    %572 = vmatpush1.msra.mxu0 0.0
    %573 = vmatprep.subr.mxu0 0.0
    %574 = vmatpush1.msra.mxu0 0.0
    %575 = vmatprep.subr.mxu0 0.0
    %576 = vmatpush1.msra.mxu0 0.0
    %577 = vmatprep.subr.mxu0 0.0
    %578 = vmatpush1.msra.mxu0 0.0
    %579 = vmatprep.subr.mxu0 0.0
    %580 = vmatpush1.msra.mxu0 0.0
    %581 = vmatprep.subr.mxu0 0.0
    %582 = vmatpush1.msra.mxu0 0.0
    %583 = vmatprep.subr.mxu0 0.0
    %584 = vmatpush1.msra.mxu0 0.0
    %585 = vmatprep.subr.mxu0 0.0
    %586 = vmatpush1.msra.mxu0 0.0
    %587 = vmatprep.subr.mxu0 0.0
    %588 = vmatpush1.msra.mxu0 0.0
    %589 = vmatprep.subr.mxu0 0.0
    %590 = vmatpush1.msra.mxu0 0.0
    %591 = vmatprep.subr.mxu0 0.0
    %592 = vmatpush1.msra.mxu0 0.0
    %593 = vmatprep.subr.mxu0 0.0
    %594 = vmatpush1.msra.mxu0 0.0
    %595 = vmatprep.subr.mxu0 0.0
    %596 = vmatpush1.msra.mxu0 0.0
    %597 = vmatprep.subr.mxu0 0.0
    %598 = vmatpush1.msra.mxu0 0.0
    %599 = vmatprep.subr.mxu0 0.0
    %600 = vmatpush1.msra.mxu0 0.0
    %601 = vmatprep.subr.mxu0 0.0
    %602 = vmatpush1.msra.mxu0 0.0
    %603 = vmatprep.subr.mxu0 0.0
    %604 = vmatpush1.msra.mxu0 0.0
    %605 = vmatprep.subr.mxu0 0.0
    %606 = vmatpush1.msra.mxu0 0.0
    %607 = vmatprep.mubr.f32.mxu0 0.0
    %608 = vmatmul.mubr.f32.gmra.mrb[0].mxu0 %v448
    %v609 = vpop.f32.mrb[0].mxu0
    %v610 = vadd.f32 0.0, %v609
    %v611 = vpop.f32.mrb[0].mxu0
    %v612 = vadd.f32 0.0, %v611
    %613 = vmatprep.mubr.f32.mxu0 0.0
    %614 = vmatmul.mubr.f32.gmra.mrb[0].mxu0 %v451
    %v615 = vpop.f32.mrb[0].mxu0
    %v616 = vadd.f32 0.0, %v615
    %v617 = vpop.f32.mrb[0].mxu0
    %v618 = vadd.f32 0.0, %v617
    %619 = vmatprep.mubr.f32.mxu0 0.0
    %620 = vmatmul.mubr.f32.gmra.mrb[0].mxu0 %v454
    %v621 = vpop.f32.mrb[0].mxu0
    %v622 = vadd.f32 0.0, %v621
    %v623 = vpop.f32.mrb[0].mxu0
    %v624 = vadd.f32 0.0, %v623
    %625 = vmatprep.mubr.f32.mxu0 0.0
    %626 = vmatmul.mubr.f32.gmra.mrb[0].mxu0 %v457
    %v627 = vpop.f32.mrb[0].mxu0
    %v628 = vadd.f32 0.0, %v627
    %v629 = vpop.f32.mrb[0].mxu0
    %v630 = vadd.f32 0.0, %v629
    %631 = vmatprep.mubr.f32.mxu0 0.0
    %632 = vmatmul.mubr.f32.gmra.mrb[0].mxu0 %v460
    %v633 = vpop.f32.mrb[0].mxu0
    %v634 = vadd.f32 0.0, %v633
    %v635 = vpop.f32.mrb[0].mxu0
    %v636 = vadd.f32 0.0, %v635
    %637 = vmatprep.mubr.f32.mxu0 0.0
    %638 = vmatmul.mubr.f32.gmra.mrb[0].mxu0 %v463
    %v639 = vpop.f32.mrb[0].mxu0
    %v640 = vadd.f32 0.0, %v639
    %v641 = vpop.f32.mrb[0].mxu0
    %v642 = vadd.f32 0.0, %v641
    %643 = vmatprep.mubr.f32.mxu0 0.0
    %644 = vmatmul.mubr.f32.gmra.mrb[0].mxu0 %v466
    %v645 = vpop.f32.mrb[0].mxu0
    %v646 = vadd.f32 0.0, %v645
    %v647 = vpop.f32.mrb[0].mxu0
    %v648 = vadd.f32 0.0, %v647
    %649 = vmatprep.mubr.f32.mxu0 0.0
    %650 = vmatmul.mubr.f32.gmra.mrb[0].mxu0 %v469
    %v651 = vpop.f32.mrb[0].mxu0
    %v652 = vadd.f32 0.0, %v651
    %v653 = vpop.f32.mrb[0].mxu0
    %v654 = vadd.f32 0.0, %v653
    %655 = vmatprep.mubr.f32.mxu0 0.0
    %656 = vmatmul.mubr.f32.gmra.mrb[0].mxu0 %v472
    %v657 = vpop.f32.mrb[0].mxu0
    %v658 = vadd.f32 0.0, %v657
    %v659 = vpop.f32.mrb[0].mxu0
    %v660 = vadd.f32 0.0, %v659
    %661 = vmatprep.mubr.f32.mxu0 0.0
    %662 = vmatmul.mubr.f32.gmra.mrb[0].mxu0 %v475
    %v663 = vpop.f32.mrb[0].mxu0
    %v664 = vadd.f32 0.0, %v663
    %v665 = vpop.f32.mrb[0].mxu0
    %v666 = vadd.f32 0.0, %v665
    %667 = vmatprep.mubr.f32.mxu0 0.0
    %668 = vmatmul.mubr.f32.gmra.mrb[0].mxu0 %v478
    %v669 = vpop.f32.mrb[0].mxu0
    %v670 = vadd.f32 0.0, %v669
    %v671 = vpop.f32.mrb[0].mxu0
    %v672 = vadd.f32 0.0, %v671
    %673 = vmatprep.mubr.f32.mxu0 0.0
    %674 = vmatmul.mubr.f32.gmra.mrb[0].mxu0 %v481
    %v675 = vpop.f32.mrb[0].mxu0
    %v676 = vadd.f32 0.0, %v675
    %v677 = vpop.f32.mrb[0].mxu0
    %v678 = vadd.f32 0.0, %v677
    %679 = vmatprep.mubr.f32.mxu0 0.0
    %680 = vmatmul.mubr.f32.gmra.mrb[0].mxu0 %v484
    %v681 = vpop.f32.mrb[0].mxu0
    %v682 = vadd.f32 0.0, %v681
    %v683 = vpop.f32.mrb[0].mxu0
    %v684 = vadd.f32 0.0, %v683
    %685 = vmatprep.mubr.f32.mxu0 0.0
    %686 = vmatmul.mubr.f32.gmra.mrb[0].mxu0 %v487
    %v687 = vpop.f32.mrb[0].mxu0
    %v688 = vadd.f32 0.0, %v687
    %v689 = vpop.f32.mrb[0].mxu0
    %v690 = vadd.f32 0.0, %v689
    %691 = vmatprep.mubr.f32.mxu0 0.0
    %692 = vmatmul.mubr.f32.gmra.mrb[0].mxu0 %v490
    %v693 = vpop.f32.mrb[0].mxu0
    %v694 = vadd.f32 0.0, %v693
    %v695 = vpop.f32.mrb[0].mxu0
    %v696 = vadd.f32 0.0, %v695
    %697 = vmatprep.mubr.f32.mxu0 0.0
    %698 = vmatmul.mubr.f32.gmra.mrb[0].mxu0 %v493
    %v699 = vpop.f32.mrb[0].mxu0
    %v700 = vadd.f32 0.0, %v699
    %v701 = vpop.f32.mrb[0].mxu0
    %v702 = vadd.f32 0.0, %v701
    %703 = vmatprep.mubr.f32.mxu0 0.0
    %704 = vmatmul.mubr.f32.gmra.mrb[0].mxu0 %v496
    %v705 = vpop.f32.mrb[0].mxu0
    %v706 = vadd.f32 0.0, %v705
    %v707 = vpop.f32.mrb[0].mxu0
    %v708 = vadd.f32 0.0, %v707
    %709 = vmatprep.mubr.f32.mxu0 0.0
    %710 = vmatmul.mubr.f32.gmra.mrb[0].mxu0 %v499
    %v711 = vpop.f32.mrb[0].mxu0
    %v712 = vadd.f32 0.0, %v711
    %v713 = vpop.f32.mrb[0].mxu0
    %v714 = vadd.f32 0.0, %v713
    %715 = vmatprep.mubr.f32.mxu0 0.0
    %716 = vmatmul.mubr.f32.gmra.mrb[0].mxu0 %v502
    %v717 = vpop.f32.mrb[0].mxu0
    %v718 = vadd.f32 0.0, %v717
    %v719 = vpop.f32.mrb[0].mxu0
    %v720 = vadd.f32 0.0, %v719
    %721 = vmatprep.mubr.f32.mxu0 0.0
    %722 = vmatmul.mubr.f32.gmra.mrb[0].mxu0 %v505
    %v723 = vpop.f32.mrb[0].mxu0
    %v724 = vadd.f32 0.0, %v723
    %v725 = vpop.f32.mrb[0].mxu0
    %v726 = vadd.f32 0.0, %v725
    %727 = vmatprep.mubr.f32.mxu0 0.0
    %728 = vmatmul.mubr.f32.gmra.mrb[0].mxu0 %v508
    %v729 = vpop.f32.mrb[0].mxu0
    %v730 = vadd.f32 0.0, %v729
    %v731 = vpop.f32.mrb[0].mxu0
    %v732 = vadd.f32 0.0, %v731
    %733 = vmatprep.mubr.f32.mxu0 0.0
    %734 = vmatmul.mubr.f32.gmra.mrb[0].mxu0 %v511
    %v735 = vpop.f32.mrb[0].mxu0
    %v736 = vadd.f32 0.0, %v735
    %v737 = vpop.f32.mrb[0].mxu0
    %v738 = vadd.f32 0.0, %v737
    %739 = vmatprep.mubr.f32.mxu0 0.0
    %740 = vmatmul.mubr.f32.gmra.mrb[0].mxu0 %v514
    %v741 = vpop.f32.mrb[0].mxu0
    %v742 = vadd.f32 0.0, %v741
    %v743 = vpop.f32.mrb[0].mxu0
    %v744 = vadd.f32 0.0, %v743
    %745 = vmatprep.mubr.f32.mxu0 0.0
    %746 = vmatmul.mubr.f32.gmra.mrb[0].mxu0 %v517
    %v747 = vpop.f32.mrb[0].mxu0
    %v748 = vadd.f32 0.0, %v747
    %v749 = vpop.f32.mrb[0].mxu0
    %v750 = vadd.f32 0.0, %v749
    %751 = vmatprep.mubr.f32.mxu0 0.0
    %752 = vmatmul.mubr.f32.gmra.mrb[0].mxu0 %v520
    %v753 = vpop.f32.mrb[0].mxu0
    %v754 = vadd.f32 0.0, %v753
    %v755 = vpop.f32.mrb[0].mxu0
    %v756 = vadd.f32 0.0, %v755
    %757 = vmatprep.mubr.f32.mxu0 0.0
    %758 = vmatmul.mubr.f32.gmra.mrb[0].mxu0 %v523
    %v759 = vpop.f32.mrb[0].mxu0
    %v760 = vadd.f32 0.0, %v759
    %v761 = vpop.f32.mrb[0].mxu0
    %v762 = vadd.f32 0.0, %v761
    %763 = vmatprep.mubr.f32.mxu0 0.0
    %764 = vmatmul.mubr.f32.gmra.mrb[0].mxu0 %v526
    %v765 = vpop.f32.mrb[0].mxu0
    %v766 = vadd.f32 0.0, %v765
    %v767 = vpop.f32.mrb[0].mxu0
    %v768 = vadd.f32 0.0, %v767
    %769 = vmatprep.mubr.f32.mxu0 0.0
    %770 = vmatmul.mubr.f32.gmra.mrb[0].mxu0 %v529
    %v771 = vpop.f32.mrb[0].mxu0
    %v772 = vadd.f32 0.0, %v771
    %v773 = vpop.f32.mrb[0].mxu0
    %v774 = vadd.f32 0.0, %v773
    %775 = vmatprep.mubr.f32.mxu0 0.0
    %776 = vmatmul.mubr.f32.gmra.mrb[0].mxu0 %v532
    %v777 = vpop.f32.mrb[0].mxu0
    %v778 = vadd.f32 0.0, %v777
    %v779 = vpop.f32.mrb[0].mxu0
    %v780 = vadd.f32 0.0, %v779
    %781 = vmatprep.mubr.f32.mxu0 0.0
    %782 = vmatmul.mubr.f32.gmra.mrb[0].mxu0 %v535
    %v783 = vpop.f32.mrb[0].mxu0
    %v784 = vadd.f32 0.0, %v783
    %v785 = vpop.f32.mrb[0].mxu0
    %v786 = vadd.f32 0.0, %v785
    %787 = vmatprep.mubr.f32.mxu0 0.0
    %788 = vmatmul.mubr.f32.gmra.mrb[0].mxu0 %v538
    %v789 = vpop.f32.mrb[0].mxu0
    %v790 = vadd.f32 0.0, %v789
    %v791 = vpop.f32.mrb[0].mxu0
    %v792 = vadd.f32 0.0, %v791
    %793 = vmatprep.mubr.f32.mxu0 0.0
    %794 = vmatmul.mubr.f32.gmra.mrb[0].mxu0 %v541
    %v795 = vpop.f32.mrb[0].mxu0
    %v796 = vadd.f32 0.0, %v795
    %v797 = vpop.f32.mrb[0].mxu0
    %v798 = vadd.f32 0.0, %v797
    %799 = vdwg.mxu0
    %800 = vmatprep.subr.mxu0 0.0
    %801 = vmatpush1.msra.mxu0 %v445
    %802 = vmatprep.subr.mxu0 0.0
    %803 = vmatpush1.msra.mxu0 0.0
    %804 = vmatprep.subr.mxu0 0.0
    %805 = vmatpush1.msra.mxu0 0.0
    %806 = vmatprep.subr.mxu0 0.0
    %807 = vmatpush1.msra.mxu0 0.0
    %808 = vmatprep.subr.mxu0 0.0
    %809 = vmatpush1.msra.mxu0 0.0
    %810 = vmatprep.subr.mxu0 0.0
    %811 = vmatpush1.msra.mxu0 0.0
    %812 = vmatprep.subr.mxu0 0.0
    %813 = vmatpush1.msra.mxu0 0.0
    %814 = vmatprep.subr.mxu0 0.0
    %815 = vmatpush1.msra.mxu0 0.0
    %816 = vmatprep.subr.mxu0 0.0
    %817 = vmatpush1.msra.mxu0 0.0
    %818 = vmatprep.subr.mxu0 0.0
    %819 = vmatpush1.msra.mxu0 0.0
    %820 = vmatprep.subr.mxu0 0.0
    %821 = vmatpush1.msra.mxu0 0.0
    %822 = vmatprep.subr.mxu0 0.0
    %823 = vmatpush1.msra.mxu0 0.0
    %824 = vmatprep.subr.mxu0 0.0
    %825 = vmatpush1.msra.mxu0 0.0
    %826 = vmatprep.subr.mxu0 0.0
    %827 = vmatpush1.msra.mxu0 0.0
    %828 = vmatprep.subr.mxu0 0.0
    %829 = vmatpush1.msra.mxu0 0.0
    %830 = vmatprep.subr.mxu0 0.0
    %831 = vmatpush1.msra.mxu0 0.0
    %832 = vmatprep.subr.mxu0 0.0
    %833 = vmatpush1.msra.mxu0 0.0
    %834 = vmatprep.subr.mxu0 0.0
    %835 = vmatpush1.msra.mxu0 0.0
    %836 = vmatprep.subr.mxu0 0.0
    %837 = vmatpush1.msra.mxu0 0.0
    %838 = vmatprep.subr.mxu0 0.0
    %839 = vmatpush1.msra.mxu0 0.0
    %840 = vmatprep.subr.mxu0 0.0
    %841 = vmatpush1.msra.mxu0 0.0
    %842 = vmatprep.subr.mxu0 0.0
    %843 = vmatpush1.msra.mxu0 0.0
    %844 = vmatprep.subr.mxu0 0.0
    %845 = vmatpush1.msra.mxu0 0.0
    %846 = vmatprep.subr.mxu0 0.0
    %847 = vmatpush1.msra.mxu0 0.0
    %848 = vmatprep.subr.mxu0 0.0
    %849 = vmatpush1.msra.mxu0 0.0
    %850 = vmatprep.subr.mxu0 0.0
    %851 = vmatpush1.msra.mxu0 0.0
    %852 = vmatprep.subr.mxu0 0.0
    %853 = vmatpush1.msra.mxu0 0.0
    %854 = vmatprep.subr.mxu0 0.0
    %855 = vmatpush1.msra.mxu0 0.0
    %856 = vmatprep.subr.mxu0 0.0
    %857 = vmatpush1.msra.mxu0 0.0
    %858 = vmatprep.subr.mxu0 0.0
    %859 = vmatpush1.msra.mxu0 0.0
    %860 = vmatprep.subr.mxu0 0.0
    %861 = vmatpush1.msra.mxu0 0.0
    %862 = vmatprep.subr.mxu0 0.0
    %863 = vmatpush1.msra.mxu0 0.0
    %864 = vmatprep.mubr.f32.mxu0 0.0
    %865 = vmatmul.mubr.f32.gmra.mrb[0].mxu0 %v448
    %v866 = vpop.f32.mrb[0].mxu0
    %v867 = vadd.f32 0.0, %v866
    %v868 = vpop.f32.mrb[0].mxu0
    %869 = vmatprep.mubr.f32.mxu0 0.0
    %870 = vmatmul.mubr.f32.gmra.mrb[0].mxu0 %v451
    %v871 = vpop.f32.mrb[0].mxu0
    %v872 = vadd.f32 0.0, %v871
    %v873 = vpop.f32.mrb[0].mxu0
    %874 = vmatprep.mubr.f32.mxu0 0.0
    %875 = vmatmul.mubr.f32.gmra.mrb[0].mxu0 %v454
    %v876 = vpop.f32.mrb[0].mxu0
    %v877 = vadd.f32 0.0, %v876
    %v878 = vpop.f32.mrb[0].mxu0
    %879 = vmatprep.mubr.f32.mxu0 0.0
    %880 = vmatmul.mubr.f32.gmra.mrb[0].mxu0 %v457
    %v881 = vpop.f32.mrb[0].mxu0
    %v882 = vadd.f32 0.0, %v881
    %v883 = vpop.f32.mrb[0].mxu0
    %884 = vmatprep.mubr.f32.mxu0 0.0
    %885 = vmatmul.mubr.f32.gmra.mrb[0].mxu0 %v460
    %v886 = vpop.f32.mrb[0].mxu0
    %v887 = vadd.f32 0.0, %v886
    %v888 = vpop.f32.mrb[0].mxu0
    %889 = vmatprep.mubr.f32.mxu0 0.0
    %890 = vmatmul.mubr.f32.gmra.mrb[0].mxu0 %v463
    %v891 = vpop.f32.mrb[0].mxu0
    %v892 = vadd.f32 0.0, %v891
    %v893 = vpop.f32.mrb[0].mxu0
    %894 = vmatprep.mubr.f32.mxu0 0.0
    %895 = vmatmul.mubr.f32.gmra.mrb[0].mxu0 %v466
    %v896 = vpop.f32.mrb[0].mxu0
    %v897 = vadd.f32 0.0, %v896
    %v898 = vpop.f32.mrb[0].mxu0
    %899 = vmatprep.mubr.f32.mxu0 0.0
    %900 = vmatmul.mubr.f32.gmra.mrb[0].mxu0 %v469
    %v901 = vpop.f32.mrb[0].mxu0
    %v902 = vadd.f32 0.0, %v901
    %v903 = vpop.f32.mrb[0].mxu0
    %904 = vmatprep.mubr.f32.mxu0 0.0
    %905 = vmatmul.mubr.f32.gmra.mrb[0].mxu0 %v472
    %v906 = vpop.f32.mrb[0].mxu0
    %v907 = vadd.f32 0.0, %v906
    %v908 = vpop.f32.mrb[0].mxu0
    %909 = vmatprep.mubr.f32.mxu0 0.0
    %910 = vmatmul.mubr.f32.gmra.mrb[0].mxu0 %v475
    %v911 = vpop.f32.mrb[0].mxu0
    %v912 = vadd.f32 0.0, %v911
    %v913 = vpop.f32.mrb[0].mxu0
    %914 = vmatprep.mubr.f32.mxu0 0.0
    %915 = vmatmul.mubr.f32.gmra.mrb[0].mxu0 %v478
    %v916 = vpop.f32.mrb[0].mxu0
    %v917 = vadd.f32 0.0, %v916
    %v918 = vpop.f32.mrb[0].mxu0
    %919 = vmatprep.mubr.f32.mxu0 0.0
    %920 = vmatmul.mubr.f32.gmra.mrb[0].mxu0 %v481
    %v921 = vpop.f32.mrb[0].mxu0
    %v922 = vadd.f32 0.0, %v921
    %v923 = vpop.f32.mrb[0].mxu0
    %924 = vmatprep.mubr.f32.mxu0 0.0
    %925 = vmatmul.mubr.f32.gmra.mrb[0].mxu0 %v484
    %v926 = vpop.f32.mrb[0].mxu0
    %v927 = vadd.f32 0.0, %v926
    %v928 = vpop.f32.mrb[0].mxu0
    %929 = vmatprep.mubr.f32.mxu0 0.0
    %930 = vmatmul.mubr.f32.gmra.mrb[0].mxu0 %v487
    %v931 = vpop.f32.mrb[0].mxu0
    %v932 = vadd.f32 0.0, %v931
    %v933 = vpop.f32.mrb[0].mxu0
    %934 = vmatprep.mubr.f32.mxu0 0.0
    %935 = vmatmul.mubr.f32.gmra.mrb[0].mxu0 %v490
    %v936 = vpop.f32.mrb[0].mxu0
    %v937 = vadd.f32 0.0, %v936
    %v938 = vpop.f32.mrb[0].mxu0
    %939 = vmatprep.mubr.f32.mxu0 0.0
    %940 = vmatmul.mubr.f32.gmra.mrb[0].mxu0 %v493
    %v941 = vpop.f32.mrb[0].mxu0
    %v942 = vadd.f32 0.0, %v941
    %v943 = vpop.f32.mrb[0].mxu0
    %944 = vmatprep.mubr.f32.mxu0 0.0
    %945 = vmatmul.mubr.f32.gmra.mrb[0].mxu0 %v496
    %v946 = vpop.f32.mrb[0].mxu0
    %v947 = vadd.f32 0.0, %v946
    %v948 = vpop.f32.mrb[0].mxu0
    %949 = vmatprep.mubr.f32.mxu0 0.0
    %950 = vmatmul.mubr.f32.gmra.mrb[0].mxu0 %v499
    %v951 = vpop.f32.mrb[0].mxu0
    %v952 = vadd.f32 0.0, %v951
    %v953 = vpop.f32.mrb[0].mxu0
    %954 = vmatprep.mubr.f32.mxu0 0.0
    %955 = vmatmul.mubr.f32.gmra.mrb[0].mxu0 %v502
    %v956 = vpop.f32.mrb[0].mxu0
    %v957 = vadd.f32 0.0, %v956
    %v958 = vpop.f32.mrb[0].mxu0
    %959 = vmatprep.mubr.f32.mxu0 0.0
    %960 = vmatmul.mubr.f32.gmra.mrb[0].mxu0 %v505
    %v961 = vpop.f32.mrb[0].mxu0
    %v962 = vadd.f32 0.0, %v961
    %v963 = vpop.f32.mrb[0].mxu0
    %964 = vmatprep.mubr.f32.mxu0 0.0
    %965 = vmatmul.mubr.f32.gmra.mrb[0].mxu0 %v508
    %v966 = vpop.f32.mrb[0].mxu0
    %v967 = vadd.f32 0.0, %v966
    %v968 = vpop.f32.mrb[0].mxu0
    %969 = vmatprep.mubr.f32.mxu0 0.0
    %970 = vmatmul.mubr.f32.gmra.mrb[0].mxu0 %v511
    %v971 = vpop.f32.mrb[0].mxu0
    %v972 = vadd.f32 0.0, %v971
    %v973 = vpop.f32.mrb[0].mxu0
    %974 = vmatprep.mubr.f32.mxu0 0.0
    %975 = vmatmul.mubr.f32.gmra.mrb[0].mxu0 %v514
    %v976 = vpop.f32.mrb[0].mxu0
    %v977 = vadd.f32 0.0, %v976
    %v978 = vpop.f32.mrb[0].mxu0
    %979 = vmatprep.mubr.f32.mxu0 0.0
    %980 = vmatmul.mubr.f32.gmra.mrb[0].mxu0 %v517
    %v981 = vpop.f32.mrb[0].mxu0
    %v982 = vadd.f32 0.0, %v981
    %v983 = vpop.f32.mrb[0].mxu0
    %984 = vmatprep.mubr.f32.mxu0 0.0
    %985 = vmatmul.mubr.f32.gmra.mrb[0].mxu0 %v520
    %v986 = vpop.f32.mrb[0].mxu0
    %v987 = vadd.f32 0.0, %v986
    %v988 = vpop.f32.mrb[0].mxu0
    %989 = vmatprep.mubr.f32.mxu0 0.0
    %990 = vmatmul.mubr.f32.gmra.mrb[0].mxu0 %v523
    %v991 = vpop.f32.mrb[0].mxu0
    %v992 = vadd.f32 0.0, %v991
    %v993 = vpop.f32.mrb[0].mxu0
    %994 = vmatprep.mubr.f32.mxu0 0.0
    %995 = vmatmul.mubr.f32.gmra.mrb[0].mxu0 %v526
    %v996 = vpop.f32.mrb[0].mxu0
    %v997 = vadd.f32 0.0, %v996
    %v998 = vpop.f32.mrb[0].mxu0
    %999 = vmatprep.mubr.f32.mxu0 0.0
    %1000 = vmatmul.mubr.f32.gmra.mrb[0].mxu0 %v529
    %v1001 = vpop.f32.mrb[0].mxu0
    %v1002 = vadd.f32 0.0, %v1001
    %v1003 = vpop.f32.mrb[0].mxu0
    %1004 = vmatprep.mubr.f32.mxu0 0.0
    %1005 = vmatmul.mubr.f32.gmra.mrb[0].mxu0 %v532
    %v1006 = vpop.f32.mrb[0].mxu0
    %v1007 = vadd.f32 0.0, %v1006
    %v1008 = vpop.f32.mrb[0].mxu0
    %1009 = vmatprep.mubr.f32.mxu0 0.0
    %1010 = vmatmul.mubr.f32.gmra.mrb[0].mxu0 %v535
    %v1011 = vpop.f32.mrb[0].mxu0
    %v1012 = vadd.f32 0.0, %v1011
    %v1013 = vpop.f32.mrb[0].mxu0
    %1014 = vmatprep.mubr.f32.mxu0 0.0
    %1015 = vmatmul.mubr.f32.gmra.mrb[0].mxu0 %v538
    %v1016 = vpop.f32.mrb[0].mxu0
    %v1017 = vadd.f32 0.0, %v1016
    %v1018 = vpop.f32.mrb[0].mxu0
    %1019 = vmatprep.mubr.f32.mxu0 0.0
    %1020 = vmatmul.mubr.f32.gmra.mrb[0].mxu0 %v541
    %v1021 = vpop.f32.mrb[0].mxu0
    %v1022 = vadd.f32 0.0, %v1021
    %v1023 = vpop.f32.mrb[0].mxu0
    %1024 = vdwg.mxu0
    %v1025 = vmul.f32 %v610, %v708
    %v1026 = vmul.f32 %v616, %v714
    %v1027 = vmul.f32 %v622, %v720
    %v1028 = vmul.f32 %v628, %v726
    %v1029 = vmul.f32 %v634, %v732
    %v1030 = vmul.f32 %v640, %v738
    %v1031 = vmul.f32 %v646, %v744
    %v1032 = vmul.f32 %v652, %v750
    %v1033 = vmul.f32 %v658, %v756
    %v1034 = vmul.f32 %v664, %v762
    %v1035 = vmul.f32 %v670, %v768
    %v1036 = vmul.f32 %v676, %v774
    %v1037 = vmul.f32 %v682, %v780
    %v1038 = vmul.f32 %v688, %v786
    %v1039 = vmul.f32 %v694, %v792
    %v1040 = vmul.f32 %v700, %v798
    %1041 = vadd.xlane.f32.xlu0 %v1025
    %v1042 = vpop.xlane.xlu0 %1041
    %1043 = vadd.xlane.f32.xlu0 %v1026
    %v1044 = vpop.xlane.xlu0 %1043
    %1045 = vadd.xlane.f32.xlu0 %v1027
    %v1046 = vpop.xlane.xlu0 %1045
    %1047 = vadd.xlane.f32.xlu0 %v1028
    %v1048 = vpop.xlane.xlu0 %1047
    %1049 = vadd.xlane.f32.xlu0 %v1029
    %v1050 = vpop.xlane.xlu0 %1049
    %1051 = vadd.xlane.f32.xlu0 %v1030
    %v1052 = vpop.xlane.xlu0 %1051
    %1053 = vadd.xlane.f32.xlu0 %v1031
    %v1054 = vpop.xlane.xlu0 %1053
    %1055 = vadd.xlane.f32.xlu0 %v1032
    %v1056 = vpop.xlane.xlu0 %1055
    %1057 = vadd.xlane.f32.xlu0 %v1033
    %v1058 = vpop.xlane.xlu0 %1057
    %1059 = vadd.xlane.f32.xlu0 %v1034
    %v1060 = vpop.xlane.xlu0 %1059
    %1061 = vadd.xlane.f32.xlu0 %v1035
    %v1062 = vpop.xlane.xlu0 %1061
    %1063 = vadd.xlane.f32.xlu0 %v1036
    %v1064 = vpop.xlane.xlu0 %1063
    %1065 = vadd.xlane.f32.xlu0 %v1037
    %v1066 = vpop.xlane.xlu0 %1065
    %1067 = vadd.xlane.f32.xlu0 %v1038
    %v1068 = vpop.xlane.xlu0 %1067
    %1069 = vadd.xlane.f32.xlu0 %v1039
    %v1070 = vpop.xlane.xlu0 %1069
    %1071 = vadd.xlane.f32.xlu0 %v1040
    %v1072 = vpop.xlane.xlu0 %1071
    %v1073 = vmul.f32 %v612, %v706
    %v1074 = vmul.f32 %v618, %v712
    %v1075 = vmul.f32 %v624, %v718
    %v1076 = vmul.f32 %v630, %v724
    %v1077 = vmul.f32 %v636, %v730
    %v1078 = vmul.f32 %v642, %v736
    %v1079 = vmul.f32 %v648, %v742
    %v1080 = vmul.f32 %v654, %v748
    %v1081 = vmul.f32 %v660, %v754
    %v1082 = vmul.f32 %v666, %v760
    %v1083 = vmul.f32 %v672, %v766
    %v1084 = vmul.f32 %v678, %v772
    %v1085 = vmul.f32 %v684, %v778
    %v1086 = vmul.f32 %v690, %v784
    %v1087 = vmul.f32 %v696, %v790
    %v1088 = vmul.f32 %v702, %v796
    %1089 = vadd.xlane.f32.xlu0 %v1073
    %v1090 = vpop.xlane.xlu0 %1089
    %1091 = vadd.xlane.f32.xlu0 %v1074
    %v1092 = vpop.xlane.xlu0 %1091
    %1093 = vadd.xlane.f32.xlu0 %v1075
    %v1094 = vpop.xlane.xlu0 %1093
    %1095 = vadd.xlane.f32.xlu0 %v1076
    %v1096 = vpop.xlane.xlu0 %1095
    %1097 = vadd.xlane.f32.xlu0 %v1077
    %v1098 = vpop.xlane.xlu0 %1097
    %1099 = vadd.xlane.f32.xlu0 %v1078
    %v1100 = vpop.xlane.xlu0 %1099
    %1101 = vadd.xlane.f32.xlu0 %v1079
    %v1102 = vpop.xlane.xlu0 %1101
    %1103 = vadd.xlane.f32.xlu0 %v1080
    %v1104 = vpop.xlane.xlu0 %1103
    %1105 = vadd.xlane.f32.xlu0 %v1081
    %v1106 = vpop.xlane.xlu0 %1105
    %1107 = vadd.xlane.f32.xlu0 %v1082
    %v1108 = vpop.xlane.xlu0 %1107
    %1109 = vadd.xlane.f32.xlu0 %v1083
    %v1110 = vpop.xlane.xlu0 %1109
    %1111 = vadd.xlane.f32.xlu0 %v1084
    %v1112 = vpop.xlane.xlu0 %1111
    %1113 = vadd.xlane.f32.xlu0 %v1085
    %v1114 = vpop.xlane.xlu0 %1113
    %1115 = vadd.xlane.f32.xlu0 %v1086
    %v1116 = vpop.xlane.xlu0 %1115
    %1117 = vadd.xlane.f32.xlu0 %v1087
    %v1118 = vpop.xlane.xlu0 %1117
    %1119 = vadd.xlane.f32.xlu0 %v1088
    %v1120 = vpop.xlane.xlu0 %1119
    %v1121 = vmul.f32 %v867, %v947
    %v1122 = vmul.f32 %v872, %v952
    %v1123 = vmul.f32 %v877, %v957
    %v1124 = vmul.f32 %v882, %v962
    %v1125 = vmul.f32 %v887, %v967
    %v1126 = vmul.f32 %v892, %v972
    %v1127 = vmul.f32 %v897, %v977
    %v1128 = vmul.f32 %v902, %v982
    %v1129 = vmul.f32 %v907, %v987
    %v1130 = vmul.f32 %v912, %v992
    %v1131 = vmul.f32 %v917, %v997
    %v1132 = vmul.f32 %v922, %v1002
    %v1133 = vmul.f32 %v927, %v1007
    %v1134 = vmul.f32 %v932, %v1012
    %v1135 = vmul.f32 %v937, %v1017
    %v1136 = vmul.f32 %v942, %v1022
    %1137 = vadd.xlane.f32.xlu0 %v1121
    %v1138 = vpop.xlane.xlu0 %1137
    %1139 = vadd.xlane.f32.xlu0 %v1122
    %v1140 = vpop.xlane.xlu0 %1139
    %1141 = vadd.xlane.f32.xlu0 %v1123
    %v1142 = vpop.xlane.xlu0 %1141
    %1143 = vadd.xlane.f32.xlu0 %v1124
    %v1144 = vpop.xlane.xlu0 %1143
    %1145 = vadd.xlane.f32.xlu0 %v1125
    %v1146 = vpop.xlane.xlu0 %1145
    %1147 = vadd.xlane.f32.xlu0 %v1126
    %v1148 = vpop.xlane.xlu0 %1147
    %1149 = vadd.xlane.f32.xlu0 %v1127
    %v1150 = vpop.xlane.xlu0 %1149
    %1151 = vadd.xlane.f32.xlu0 %v1128
    %v1152 = vpop.xlane.xlu0 %1151
    %1153 = vadd.xlane.f32.xlu0 %v1129
    %v1154 = vpop.xlane.xlu0 %1153
    %1155 = vadd.xlane.f32.xlu0 %v1130
    %v1156 = vpop.xlane.xlu0 %1155
    %1157 = vadd.xlane.f32.xlu0 %v1131
    %v1158 = vpop.xlane.xlu0 %1157
    %1159 = vadd.xlane.f32.xlu0 %v1132
    %v1160 = vpop.xlane.xlu0 %1159
    %1161 = vadd.xlane.f32.xlu0 %v1133
    %v1162 = vpop.xlane.xlu0 %1161
    %1163 = vadd.xlane.f32.xlu0 %v1134
    %v1164 = vpop.xlane.xlu0 %1163
    %1165 = vadd.xlane.f32.xlu0 %v1135
    %v1166 = vpop.xlane.xlu0 %1165
    %1167 = vadd.xlane.f32.xlu0 %v1136
    %v1168 = vpop.xlane.xlu0 %1167
    %v1169 = vcvt.s32.f32 %v187
    %v1170 = vcvt.s32.f32 %v188
    %v1171 = vcvt.s32.f32 %v189
    %v1172 = vcvt.s32.f32 %v190
    %v1173 = vcvt.s32.f32 %v191
    %v1174 = vcvt.s32.f32 %v192
    %v1175 = vcvt.s32.f32 %v193
    %v1176 = vcvt.s32.f32 %v194
    %v1177 = vcvt.s32.f32 %v195
    %v1178 = vcvt.s32.f32 %v196
    %v1179 = vcvt.s32.f32 %v197
    %v1180 = vcvt.s32.f32 %v198
    %v1181 = vcvt.s32.f32 %v199
    %v1182 = vcvt.s32.f32 %v200
    %v1183 = vcvt.s32.f32 %v201
    %v1184 = vcvt.s32.f32 %v202
    %v1185 = vmax.f32 %v1042, -70.0
    %v1186 = vmax.f32 %v1044, -70.0
    %v1187 = vmax.f32 %v1046, -70.0
    %v1188 = vmax.f32 %v1048, -70.0
    %v1189 = vmax.f32 %v1050, -70.0
    %v1190 = vmax.f32 %v1052, -70.0
    %v1191 = vmax.f32 %v1054, -70.0
    %v1192 = vmax.f32 %v1056, -70.0
    %v1193 = vmax.f32 %v1058, -70.0
    %v1194 = vmax.f32 %v1060, -70.0
    %v1195 = vmax.f32 %v1062, -70.0
    %v1196 = vmax.f32 %v1064, -70.0
    %v1197 = vmax.f32 %v1066, -70.0
    %v1198 = vmax.f32 %v1068, -70.0
    %v1199 = vmax.f32 %v1070, -70.0
    %v1200 = vmax.f32 %v1072, -70.0
    %v1201 = vmin.f32 %v1185, 0.0
    %v1202 = vmin.f32 %v1186, 0.0
    %v1203 = vmin.f32 %v1187, 0.0
    %v1204 = vmin.f32 %v1188, 0.0
    %v1205 = vmin.f32 %v1189, 0.0
    %v1206 = vmin.f32 %v1190, 0.0
    %v1207 = vmin.f32 %v1191, 0.0
    %v1208 = vmin.f32 %v1192, 0.0
    %v1209 = vmin.f32 %v1193, 0.0
    %v1210 = vmin.f32 %v1194, 0.0
    %v1211 = vmin.f32 %v1195, 0.0
    %v1212 = vmin.f32 %v1196, 0.0
    %v1213 = vmin.f32 %v1197, 0.0
    %v1214 = vmin.f32 %v1198, 0.0
    %v1215 = vmin.f32 %v1199, 0.0
    %v1216 = vmin.f32 %v1200, 0.0
    %v1217 = vand.u32 2147483647, %v1185
    %v1218 = vand.u32 2147483647, %v1186
    %v1219 = vand.u32 2147483647, %v1187
    %v1220 = vand.u32 2147483647, %v1188
    %v1221 = vand.u32 2147483647, %v1189
    %v1222 = vand.u32 2147483647, %v1190
    %v1223 = vand.u32 2147483647, %v1191
    %v1224 = vand.u32 2147483647, %v1192
    %v1225 = vand.u32 2147483647, %v1193
    %v1226 = vand.u32 2147483647, %v1194
    %v1227 = vand.u32 2147483647, %v1195
    %v1228 = vand.u32 2147483647, %v1196
    %v1229 = vand.u32 2147483647, %v1197
    %v1230 = vand.u32 2147483647, %v1198
    %v1231 = vand.u32 2147483647, %v1199
    %v1232 = vand.u32 2147483647, %v1200
    %v1233 = vsub.f32 0.0, %v1217
    %v1234 = vsub.f32 0.0, %v1218
    %v1235 = vsub.f32 0.0, %v1219
    %v1236 = vsub.f32 0.0, %v1220
    %v1237 = vsub.f32 0.0, %v1221
    %v1238 = vsub.f32 0.0, %v1222
    %v1239 = vsub.f32 0.0, %v1223
    %v1240 = vsub.f32 0.0, %v1224
    %v1241 = vsub.f32 0.0, %v1225
    %v1242 = vsub.f32 0.0, %v1226
    %v1243 = vsub.f32 0.0, %v1227
    %v1244 = vsub.f32 0.0, %v1228
    %v1245 = vsub.f32 0.0, %v1229
    %v1246 = vsub.f32 0.0, %v1230
    %v1247 = vsub.f32 0.0, %v1231
    %v1248 = vsub.f32 0.0, %v1232
    %v1249 = vmul.f32 %v1233, 1.442695
    %v1250 = vpow.pop %v1249
    %v1251 = vmul.f32 %v1234, 1.442695
    %v1252 = vpow.pop %v1251
    %v1253 = vmul.f32 %v1235, 1.442695
    %v1254 = vpow.pop %v1253
    %v1255 = vmul.f32 %v1236, 1.442695
    %v1256 = vpow.pop %v1255
    %v1257 = vmul.f32 %v1237, 1.442695
    %v1258 = vpow.pop %v1257
    %v1259 = vmul.f32 %v1238, 1.442695
    %v1260 = vpow.pop %v1259
    %v1261 = vmul.f32 %v1239, 1.442695
    %v1262 = vpow.pop %v1261
    %v1263 = vmul.f32 %v1240, 1.442695
    %v1264 = vpow.pop %v1263
    %v1265 = vmul.f32 %v1241, 1.442695
    %v1266 = vpow.pop %v1265
    %v1267 = vmul.f32 %v1242, 1.442695
    %v1268 = vpow.pop %v1267
    %v1269 = vmul.f32 %v1243, 1.442695
    %v1270 = vpow.pop %v1269
    %v1271 = vmul.f32 %v1244, 1.442695
    %v1272 = vpow.pop %v1271
    %v1273 = vmul.f32 %v1245, 1.442695
    %v1274 = vpow.pop %v1273
    %v1275 = vmul.f32 %v1246, 1.442695
    %v1276 = vpow.pop %v1275
    %v1277 = vmul.f32 %v1247, 1.442695
    %v1278 = vpow.pop %v1277
    %v1279 = vmul.f32 %v1248, 1.442695
    %v1280 = vpow.pop %v1279
    %v1281 = vadd.f32 %v1250, 1.0
    %v1282 = vadd.f32 %v1252, 1.0
    %v1283 = vadd.f32 %v1254, 1.0
    %v1284 = vadd.f32 %v1256, 1.0
    %v1285 = vadd.f32 %v1258, 1.0
    %v1286 = vadd.f32 %v1260, 1.0
    %v1287 = vadd.f32 %v1262, 1.0
    %v1288 = vadd.f32 %v1264, 1.0
    %v1289 = vadd.f32 %v1266, 1.0
    %v1290 = vadd.f32 %v1268, 1.0
    %v1291 = vadd.f32 %v1270, 1.0
    %v1292 = vadd.f32 %v1272, 1.0
    %v1293 = vadd.f32 %v1274, 1.0
    %v1294 = vadd.f32 %v1276, 1.0
    %v1295 = vadd.f32 %v1278, 1.0
    %v1296 = vadd.f32 %v1280, 1.0
    %v1297 = vlog2.pop %v1281
    %v1298 = vmul.f32 %v1297, 0.6931472
    %v1299 = vlog2.pop %v1282
    %v1300 = vmul.f32 %v1299, 0.6931472
    %v1301 = vlog2.pop %v1283
    %v1302 = vmul.f32 %v1301, 0.6931472
    %v1303 = vlog2.pop %v1284
    %v1304 = vmul.f32 %v1303, 0.6931472
    %v1305 = vlog2.pop %v1285
    %v1306 = vmul.f32 %v1305, 0.6931472
    %v1307 = vlog2.pop %v1286
    %v1308 = vmul.f32 %v1307, 0.6931472
    %v1309 = vlog2.pop %v1287
    %v1310 = vmul.f32 %v1309, 0.6931472
    %v1311 = vlog2.pop %v1288
    %v1312 = vmul.f32 %v1311, 0.6931472
    %v1313 = vlog2.pop %v1289
    %v1314 = vmul.f32 %v1313, 0.6931472
    %v1315 = vlog2.pop %v1290
    %v1316 = vmul.f32 %v1315, 0.6931472
    %v1317 = vlog2.pop %v1291
    %v1318 = vmul.f32 %v1317, 0.6931472
    %v1319 = vlog2.pop %v1292
    %v1320 = vmul.f32 %v1319, 0.6931472
    %v1321 = vlog2.pop %v1293
    %v1322 = vmul.f32 %v1321, 0.6931472
    %v1323 = vlog2.pop %v1294
    %v1324 = vmul.f32 %v1323, 0.6931472
    %v1325 = vlog2.pop %v1295
    %v1326 = vmul.f32 %v1325, 0.6931472
    %v1327 = vlog2.pop %v1296
    %v1328 = vmul.f32 %v1327, 0.6931472
    %v1329 = vsub.f32 %v1201, %v1298
    %v1330 = vsub.f32 %v1202, %v1300
    %v1331 = vsub.f32 %v1203, %v1302
    %v1332 = vsub.f32 %v1204, %v1304
    %v1333 = vsub.f32 %v1205, %v1306
    %v1334 = vsub.f32 %v1206, %v1308
    %v1335 = vsub.f32 %v1207, %v1310
    %v1336 = vsub.f32 %v1208, %v1312
    %v1337 = vsub.f32 %v1209, %v1314
    %v1338 = vsub.f32 %v1210, %v1316
    %v1339 = vsub.f32 %v1211, %v1318
    %v1340 = vsub.f32 %v1212, %v1320
    %v1341 = vsub.f32 %v1213, %v1322
    %v1342 = vsub.f32 %v1214, %v1324
    %v1343 = vsub.f32 %v1215, %v1326
    %v1344 = vsub.f32 %v1216, %v1328
    %v1345 = vmax.f32 %v1090, -70.0
    %v1346 = vmax.f32 %v1092, -70.0
    %v1347 = vmax.f32 %v1094, -70.0
    %v1348 = vmax.f32 %v1096, -70.0
    %v1349 = vmax.f32 %v1098, -70.0
    %v1350 = vmax.f32 %v1100, -70.0
    %v1351 = vmax.f32 %v1102, -70.0
    %v1352 = vmax.f32 %v1104, -70.0
    %v1353 = vmax.f32 %v1106, -70.0
    %v1354 = vmax.f32 %v1108, -70.0
    %v1355 = vmax.f32 %v1110, -70.0
    %v1356 = vmax.f32 %v1112, -70.0
    %v1357 = vmax.f32 %v1114, -70.0
    %v1358 = vmax.f32 %v1116, -70.0
    %v1359 = vmax.f32 %v1118, -70.0
    %v1360 = vmax.f32 %v1120, -70.0
    %v1361 = vmin.f32 %v1345, 0.0
    %v1362 = vmin.f32 %v1346, 0.0
    %v1363 = vmin.f32 %v1347, 0.0
    %v1364 = vmin.f32 %v1348, 0.0
    %v1365 = vmin.f32 %v1349, 0.0
    %v1366 = vmin.f32 %v1350, 0.0
    %v1367 = vmin.f32 %v1351, 0.0
    %v1368 = vmin.f32 %v1352, 0.0
    %v1369 = vmin.f32 %v1353, 0.0
    %v1370 = vmin.f32 %v1354, 0.0
    %v1371 = vmin.f32 %v1355, 0.0
    %v1372 = vmin.f32 %v1356, 0.0
    %v1373 = vmin.f32 %v1357, 0.0
    %v1374 = vmin.f32 %v1358, 0.0
    %v1375 = vmin.f32 %v1359, 0.0
    %v1376 = vmin.f32 %v1360, 0.0
    %v1377 = vand.u32 2147483647, %v1345
    %v1378 = vand.u32 2147483647, %v1346
    %v1379 = vand.u32 2147483647, %v1347
    %v1380 = vand.u32 2147483647, %v1348
    %v1381 = vand.u32 2147483647, %v1349
    %v1382 = vand.u32 2147483647, %v1350
    %v1383 = vand.u32 2147483647, %v1351
    %v1384 = vand.u32 2147483647, %v1352
    %v1385 = vand.u32 2147483647, %v1353
    %v1386 = vand.u32 2147483647, %v1354
    %v1387 = vand.u32 2147483647, %v1355
    %v1388 = vand.u32 2147483647, %v1356
    %v1389 = vand.u32 2147483647, %v1357
    %v1390 = vand.u32 2147483647, %v1358
    %v1391 = vand.u32 2147483647, %v1359
    %v1392 = vand.u32 2147483647, %v1360
    %v1393 = vsub.f32 0.0, %v1377
    %v1394 = vsub.f32 0.0, %v1378
    %v1395 = vsub.f32 0.0, %v1379
    %v1396 = vsub.f32 0.0, %v1380
    %v1397 = vsub.f32 0.0, %v1381
    %v1398 = vsub.f32 0.0, %v1382
    %v1399 = vsub.f32 0.0, %v1383
    %v1400 = vsub.f32 0.0, %v1384
    %v1401 = vsub.f32 0.0, %v1385
    %v1402 = vsub.f32 0.0, %v1386
    %v1403 = vsub.f32 0.0, %v1387
    %v1404 = vsub.f32 0.0, %v1388
    %v1405 = vsub.f32 0.0, %v1389
    %v1406 = vsub.f32 0.0, %v1390
    %v1407 = vsub.f32 0.0, %v1391
    %v1408 = vsub.f32 0.0, %v1392
    %v1409 = vmul.f32 %v1393, 1.442695
    %v1410 = vpow.pop %v1409
    %v1411 = vmul.f32 %v1394, 1.442695
    %v1412 = vpow.pop %v1411
    %v1413 = vmul.f32 %v1395, 1.442695
    %v1414 = vpow.pop %v1413
    %v1415 = vmul.f32 %v1396, 1.442695
    %v1416 = vpow.pop %v1415
    %v1417 = vmul.f32 %v1397, 1.442695
    %v1418 = vpow.pop %v1417
    %v1419 = vmul.f32 %v1398, 1.442695
    %v1420 = vpow.pop %v1419
    %v1421 = vmul.f32 %v1399, 1.442695
    %v1422 = vpow.pop %v1421
    %v1423 = vmul.f32 %v1400, 1.442695
    %v1424 = vpow.pop %v1423
    %v1425 = vmul.f32 %v1401, 1.442695
    %v1426 = vpow.pop %v1425
    %v1427 = vmul.f32 %v1402, 1.442695
    %v1428 = vpow.pop %v1427
    %v1429 = vmul.f32 %v1403, 1.442695
    %v1430 = vpow.pop %v1429
    %v1431 = vmul.f32 %v1404, 1.442695
    %v1432 = vpow.pop %v1431
    %v1433 = vmul.f32 %v1405, 1.442695
    %v1434 = vpow.pop %v1433
    %v1435 = vmul.f32 %v1406, 1.442695
    %v1436 = vpow.pop %v1435
    %v1437 = vmul.f32 %v1407, 1.442695
    %v1438 = vpow.pop %v1437
    %v1439 = vmul.f32 %v1408, 1.442695
    %v1440 = vpow.pop %v1439
    %v1441 = vadd.f32 %v1410, 1.0
    %v1442 = vadd.f32 %v1412, 1.0
    %v1443 = vadd.f32 %v1414, 1.0
    %v1444 = vadd.f32 %v1416, 1.0
    %v1445 = vadd.f32 %v1418, 1.0
    %v1446 = vadd.f32 %v1420, 1.0
    %v1447 = vadd.f32 %v1422, 1.0
    %v1448 = vadd.f32 %v1424, 1.0
    %v1449 = vadd.f32 %v1426, 1.0
    %v1450 = vadd.f32 %v1428, 1.0
    %v1451 = vadd.f32 %v1430, 1.0
    %v1452 = vadd.f32 %v1432, 1.0
    %v1453 = vadd.f32 %v1434, 1.0
    %v1454 = vadd.f32 %v1436, 1.0
    %v1455 = vadd.f32 %v1438, 1.0
    %v1456 = vadd.f32 %v1440, 1.0
    %v1457 = vlog2.pop %v1441
    %v1458 = vmul.f32 %v1457, 0.6931472
    %v1459 = vlog2.pop %v1442
    %v1460 = vmul.f32 %v1459, 0.6931472
    %v1461 = vlog2.pop %v1443
    %v1462 = vmul.f32 %v1461, 0.6931472
    %v1463 = vlog2.pop %v1444
    %v1464 = vmul.f32 %v1463, 0.6931472
    %v1465 = vlog2.pop %v1445
    %v1466 = vmul.f32 %v1465, 0.6931472
    %v1467 = vlog2.pop %v1446
    %v1468 = vmul.f32 %v1467, 0.6931472
    %v1469 = vlog2.pop %v1447
    %v1470 = vmul.f32 %v1469, 0.6931472
    %v1471 = vlog2.pop %v1448
    %v1472 = vmul.f32 %v1471, 0.6931472
    %v1473 = vlog2.pop %v1449
    %v1474 = vmul.f32 %v1473, 0.6931472
    %v1475 = vlog2.pop %v1450
    %v1476 = vmul.f32 %v1475, 0.6931472
    %v1477 = vlog2.pop %v1451
    %v1478 = vmul.f32 %v1477, 0.6931472
    %v1479 = vlog2.pop %v1452
    %v1480 = vmul.f32 %v1479, 0.6931472
    %v1481 = vlog2.pop %v1453
    %v1482 = vmul.f32 %v1481, 0.6931472
    %v1483 = vlog2.pop %v1454
    %v1484 = vmul.f32 %v1483, 0.6931472
    %v1485 = vlog2.pop %v1455
    %v1486 = vmul.f32 %v1485, 0.6931472
    %v1487 = vlog2.pop %v1456
    %v1488 = vmul.f32 %v1487, 0.6931472
    %v1489 = vsub.f32 %v1361, %v1458
    %v1490 = vsub.f32 %v1362, %v1460
    %v1491 = vsub.f32 %v1363, %v1462
    %v1492 = vsub.f32 %v1364, %v1464
    %v1493 = vsub.f32 %v1365, %v1466
    %v1494 = vsub.f32 %v1366, %v1468
    %v1495 = vsub.f32 %v1367, %v1470
    %v1496 = vsub.f32 %v1368, %v1472
    %v1497 = vsub.f32 %v1369, %v1474
    %v1498 = vsub.f32 %v1370, %v1476
    %v1499 = vsub.f32 %v1371, %v1478
    %v1500 = vsub.f32 %v1372, %v1480
    %v1501 = vsub.f32 %v1373, %v1482
    %v1502 = vsub.f32 %v1374, %v1484
    %v1503 = vsub.f32 %v1375, %v1486
    %v1504 = vsub.f32 %v1376, %v1488
    %v1505 = vadd.f32 %v1329, %v1489
    %v1506 = vadd.f32 %v1330, %v1490
    %v1507 = vadd.f32 %v1331, %v1491
    %v1508 = vadd.f32 %v1332, %v1492
    %v1509 = vadd.f32 %v1333, %v1493
    %v1510 = vadd.f32 %v1334, %v1494
    %v1511 = vadd.f32 %v1335, %v1495
    %v1512 = vadd.f32 %v1336, %v1496
    %v1513 = vadd.f32 %v1337, %v1497
    %v1514 = vadd.f32 %v1338, %v1498
    %v1515 = vadd.f32 %v1339, %v1499
    %v1516 = vadd.f32 %v1340, %v1500
    %v1517 = vadd.f32 %v1341, %v1501
    %v1518 = vadd.f32 %v1342, %v1502
    %v1519 = vadd.f32 %v1343, %v1503
    %v1520 = vadd.f32 %v1344, %v1504
    %v1521 = vmul.f32 %v1169, %v1505
    %v1522 = vmul.f32 %v1170, %v1506
    %v1523 = vmul.f32 %v1171, %v1507
    %v1524 = vmul.f32 %v1172, %v1508
    %v1525 = vmul.f32 %v1173, %v1509
    %v1526 = vmul.f32 %v1174, %v1510
    %v1527 = vmul.f32 %v1175, %v1511
    %v1528 = vmul.f32 %v1176, %v1512
    %v1529 = vmul.f32 %v1177, %v1513
    %v1530 = vmul.f32 %v1178, %v1514
    %v1531 = vmul.f32 %v1179, %v1515
    %v1532 = vmul.f32 %v1180, %v1516
    %v1533 = vmul.f32 %v1181, %v1517
    %v1534 = vmul.f32 %v1182, %v1518
    %v1535 = vmul.f32 %v1183, %v1519
    %v1536 = vmul.f32 %v1184, %v1520
    %vm1537 = vcmask 7168
    %v1538 = vsel %vm1537, %v1521, 0.0
    %v1539 = vsel %vm1537, %v1522, 0.0
    %v1540 = vadd.f32 %v1538, %v1539
    %v1541 = vsel %vm1537, %v1523, 0.0
    %v1542 = vadd.f32 %v1540, %v1541
    %v1543 = vsel %vm1537, %v1524, 0.0
    %v1544 = vadd.f32 %v1542, %v1543
    %v1545 = vsel %vm1537, %v1525, 0.0
    %v1546 = vadd.f32 %v1544, %v1545
    %v1547 = vsel %vm1537, %v1526, 0.0
    %v1548 = vadd.f32 %v1546, %v1547
    %v1549 = vsel %vm1537, %v1527, 0.0
    %v1550 = vadd.f32 %v1548, %v1549
    %v1551 = vsel %vm1537, %v1528, 0.0
    %v1552 = vadd.f32 %v1550, %v1551
    %v1553 = vsel %vm1537, %v1529, 0.0
    %v1554 = vadd.f32 %v1552, %v1553
    %v1555 = vsel %vm1537, %v1530, 0.0
    %v1556 = vadd.f32 %v1554, %v1555
    %v1557 = vsel %vm1537, %v1531, 0.0
    %v1558 = vadd.f32 %v1556, %v1557
    %v1559 = vsel %vm1537, %v1532, 0.0
    %v1560 = vadd.f32 %v1558, %v1559
    %v1561 = vsel %vm1537, %v1533, 0.0
    %v1562 = vadd.f32 %v1560, %v1561
    %v1563 = vsel %vm1537, %v1534, 0.0
    %v1564 = vadd.f32 %v1562, %v1563
    %v1565 = vsel %vm1537, %v1535, 0.0
    %v1566 = vadd.f32 %v1564, %v1565
    %v1567 = vsel %vm1537, %v1536, 0.0
    %v1568 = vadd.f32 %v1566, %v1567
    %1569 = vadd.xlane.f32.xlu0 %v1568
    %v1570 = vpop.xlane.xlu0 %1569
    %v1571 = vrot.slane %v1570, 4
    %v1572 = vadd.f32 %v1570, %v1571
    %v1573 = vrot.slane %v1572, 2
    %v1574 = vadd.f32 %v1572, %v1573
    %v1575 = vrot.slane %v1574, 1
    %v1576 = vadd.f32 %v1574, %v1575
    %s1577 = vtos %v1576
    %v1578 = vmax.f32 %v1138, -70.0
    %v1579 = vmax.f32 %v1140, -70.0
    %v1580 = vmax.f32 %v1142, -70.0
    %v1581 = vmax.f32 %v1144, -70.0
    %v1582 = vmax.f32 %v1146, -70.0
    %v1583 = vmax.f32 %v1148, -70.0
    %v1584 = vmax.f32 %v1150, -70.0
    %v1585 = vmax.f32 %v1152, -70.0
    %v1586 = vmax.f32 %v1154, -70.0
    %v1587 = vmax.f32 %v1156, -70.0
    %v1588 = vmax.f32 %v1158, -70.0
    %v1589 = vmax.f32 %v1160, -70.0
    %v1590 = vmax.f32 %v1162, -70.0
    %v1591 = vmax.f32 %v1164, -70.0
    %v1592 = vmax.f32 %v1166, -70.0
    %v1593 = vmax.f32 %v1168, -70.0
    %v1594 = vmin.f32 %v1578, 0.0
    %v1595 = vmin.f32 %v1579, 0.0
    %v1596 = vmin.f32 %v1580, 0.0
    %v1597 = vmin.f32 %v1581, 0.0
    %v1598 = vmin.f32 %v1582, 0.0
    %v1599 = vmin.f32 %v1583, 0.0
    %v1600 = vmin.f32 %v1584, 0.0
    %v1601 = vmin.f32 %v1585, 0.0
    %v1602 = vmin.f32 %v1586, 0.0
    %v1603 = vmin.f32 %v1587, 0.0
    %v1604 = vmin.f32 %v1588, 0.0
    %v1605 = vmin.f32 %v1589, 0.0
    %v1606 = vmin.f32 %v1590, 0.0
    %v1607 = vmin.f32 %v1591, 0.0
    %v1608 = vmin.f32 %v1592, 0.0
    %v1609 = vmin.f32 %v1593, 0.0
    %v1610 = vand.u32 2147483647, %v1578
    %v1611 = vand.u32 2147483647, %v1579
    %v1612 = vand.u32 2147483647, %v1580
    %v1613 = vand.u32 2147483647, %v1581
    %v1614 = vand.u32 2147483647, %v1582
    %v1615 = vand.u32 2147483647, %v1583
    %v1616 = vand.u32 2147483647, %v1584
    %v1617 = vand.u32 2147483647, %v1585
    %v1618 = vand.u32 2147483647, %v1586
    %v1619 = vand.u32 2147483647, %v1587
    %v1620 = vand.u32 2147483647, %v1588
    %v1621 = vand.u32 2147483647, %v1589
    %v1622 = vand.u32 2147483647, %v1590
    %v1623 = vand.u32 2147483647, %v1591
    %v1624 = vand.u32 2147483647, %v1592
    %v1625 = vand.u32 2147483647, %v1593
    %v1626 = vsub.f32 0.0, %v1610
    %v1627 = vsub.f32 0.0, %v1611
    %v1628 = vsub.f32 0.0, %v1612
    %v1629 = vsub.f32 0.0, %v1613
    %v1630 = vsub.f32 0.0, %v1614
    %v1631 = vsub.f32 0.0, %v1615
    %v1632 = vsub.f32 0.0, %v1616
    %v1633 = vsub.f32 0.0, %v1617
    %v1634 = vsub.f32 0.0, %v1618
    %v1635 = vsub.f32 0.0, %v1619
    %v1636 = vsub.f32 0.0, %v1620
    %v1637 = vsub.f32 0.0, %v1621
    %v1638 = vsub.f32 0.0, %v1622
    %v1639 = vsub.f32 0.0, %v1623
    %v1640 = vsub.f32 0.0, %v1624
    %v1641 = vsub.f32 0.0, %v1625
    %v1642 = vmul.f32 %v1626, 1.442695
    %v1643 = vpow.pop %v1642
    %v1644 = vmul.f32 %v1627, 1.442695
    %v1645 = vpow.pop %v1644
    %v1646 = vmul.f32 %v1628, 1.442695
    %v1647 = vpow.pop %v1646
    %v1648 = vmul.f32 %v1629, 1.442695
    %v1649 = vpow.pop %v1648
    %v1650 = vmul.f32 %v1630, 1.442695
    %v1651 = vpow.pop %v1650
    %v1652 = vmul.f32 %v1631, 1.442695
    %v1653 = vpow.pop %v1652
    %v1654 = vmul.f32 %v1632, 1.442695
    %v1655 = vpow.pop %v1654
    %v1656 = vmul.f32 %v1633, 1.442695
    %v1657 = vpow.pop %v1656
    %v1658 = vmul.f32 %v1634, 1.442695
    %v1659 = vpow.pop %v1658
    %v1660 = vmul.f32 %v1635, 1.442695
    %v1661 = vpow.pop %v1660
    %v1662 = vmul.f32 %v1636, 1.442695
    %v1663 = vpow.pop %v1662
    %v1664 = vmul.f32 %v1637, 1.442695
    %v1665 = vpow.pop %v1664
    %v1666 = vmul.f32 %v1638, 1.442695
    %v1667 = vpow.pop %v1666
    %v1668 = vmul.f32 %v1639, 1.442695
    %v1669 = vpow.pop %v1668
    %v1670 = vmul.f32 %v1640, 1.442695
    %v1671 = vpow.pop %v1670
    %v1672 = vmul.f32 %v1641, 1.442695
    %v1673 = vpow.pop %v1672
    %v1674 = vadd.f32 %v1643, 1.0
    %v1675 = vadd.f32 %v1645, 1.0
    %v1676 = vadd.f32 %v1647, 1.0
    %v1677 = vadd.f32 %v1649, 1.0
    %v1678 = vadd.f32 %v1651, 1.0
    %v1679 = vadd.f32 %v1653, 1.0
    %v1680 = vadd.f32 %v1655, 1.0
    %v1681 = vadd.f32 %v1657, 1.0
    %v1682 = vadd.f32 %v1659, 1.0
    %v1683 = vadd.f32 %v1661, 1.0
    %v1684 = vadd.f32 %v1663, 1.0
    %v1685 = vadd.f32 %v1665, 1.0
    %v1686 = vadd.f32 %v1667, 1.0
    %v1687 = vadd.f32 %v1669, 1.0
    %v1688 = vadd.f32 %v1671, 1.0
    %v1689 = vadd.f32 %v1673, 1.0
    %v1690 = vlog2.pop %v1674
    %v1691 = vmul.f32 %v1690, 0.6931472
    %v1692 = vlog2.pop %v1675
    %v1693 = vmul.f32 %v1692, 0.6931472
    %v1694 = vlog2.pop %v1676
    %v1695 = vmul.f32 %v1694, 0.6931472
    %v1696 = vlog2.pop %v1677
    %v1697 = vmul.f32 %v1696, 0.6931472
    %v1698 = vlog2.pop %v1678
    %v1699 = vmul.f32 %v1698, 0.6931472
    %v1700 = vlog2.pop %v1679
    %v1701 = vmul.f32 %v1700, 0.6931472
    %v1702 = vlog2.pop %v1680
    %v1703 = vmul.f32 %v1702, 0.6931472
    %v1704 = vlog2.pop %v1681
    %v1705 = vmul.f32 %v1704, 0.6931472
    %v1706 = vlog2.pop %v1682
    %v1707 = vmul.f32 %v1706, 0.6931472
    %v1708 = vlog2.pop %v1683
    %v1709 = vmul.f32 %v1708, 0.6931472
    %v1710 = vlog2.pop %v1684
    %v1711 = vmul.f32 %v1710, 0.6931472
    %v1712 = vlog2.pop %v1685
    %v1713 = vmul.f32 %v1712, 0.6931472
    %v1714 = vlog2.pop %v1686
    %v1715 = vmul.f32 %v1714, 0.6931472
    %v1716 = vlog2.pop %v1687
    %v1717 = vmul.f32 %v1716, 0.6931472
    %v1718 = vlog2.pop %v1688
    %v1719 = vmul.f32 %v1718, 0.6931472
    %v1720 = vlog2.pop %v1689
    %v1721 = vmul.f32 %v1720, 0.6931472
    %v1722 = vsub.f32 %v1594, %v1691
    %v1723 = vsub.f32 %v1595, %v1693
    %v1724 = vsub.f32 %v1596, %v1695
    %v1725 = vsub.f32 %v1597, %v1697
    %v1726 = vsub.f32 %v1598, %v1699
    %v1727 = vsub.f32 %v1599, %v1701
    %v1728 = vsub.f32 %v1600, %v1703
    %v1729 = vsub.f32 %v1601, %v1705
    %v1730 = vsub.f32 %v1602, %v1707
    %v1731 = vsub.f32 %v1603, %v1709
    %v1732 = vsub.f32 %v1604, %v1711
    %v1733 = vsub.f32 %v1605, %v1713
    %v1734 = vsub.f32 %v1606, %v1715
    %v1735 = vsub.f32 %v1607, %v1717
    %v1736 = vsub.f32 %v1608, %v1719
    %v1737 = vsub.f32 %v1609, %v1721
    %v1738 = vmul.f32 %v1169, %v1722
    %v1739 = vmul.f32 %v1170, %v1723
    %v1740 = vmul.f32 %v1171, %v1724
    %v1741 = vmul.f32 %v1172, %v1725
    %v1742 = vmul.f32 %v1173, %v1726
    %v1743 = vmul.f32 %v1174, %v1727
    %v1744 = vmul.f32 %v1175, %v1728
    %v1745 = vmul.f32 %v1176, %v1729
    %v1746 = vmul.f32 %v1177, %v1730
    %v1747 = vmul.f32 %v1178, %v1731
    %v1748 = vmul.f32 %v1179, %v1732
    %v1749 = vmul.f32 %v1180, %v1733
    %v1750 = vmul.f32 %v1181, %v1734
    %v1751 = vmul.f32 %v1182, %v1735
    %v1752 = vmul.f32 %v1183, %v1736
    %v1753 = vmul.f32 %v1184, %v1737
    %v1754 = vsel %vm1537, %v1738, 0.0
    %v1755 = vsel %vm1537, %v1739, 0.0
    %v1756 = vadd.f32 %v1754, %v1755
    %v1757 = vsel %vm1537, %v1740, 0.0
    %v1758 = vadd.f32 %v1756, %v1757
    %v1759 = vsel %vm1537, %v1741, 0.0
    %v1760 = vadd.f32 %v1758, %v1759
    %v1761 = vsel %vm1537, %v1742, 0.0
    %v1762 = vadd.f32 %v1760, %v1761
    %v1763 = vsel %vm1537, %v1743, 0.0
    %v1764 = vadd.f32 %v1762, %v1763
    %v1765 = vsel %vm1537, %v1744, 0.0
    %v1766 = vadd.f32 %v1764, %v1765
    %v1767 = vsel %vm1537, %v1745, 0.0
    %v1768 = vadd.f32 %v1766, %v1767
    %v1769 = vsel %vm1537, %v1746, 0.0
    %v1770 = vadd.f32 %v1768, %v1769
    %v1771 = vsel %vm1537, %v1747, 0.0
    %v1772 = vadd.f32 %v1770, %v1771
    %v1773 = vsel %vm1537, %v1748, 0.0
    %v1774 = vadd.f32 %v1772, %v1773
    %v1775 = vsel %vm1537, %v1749, 0.0
    %v1776 = vadd.f32 %v1774, %v1775
    %v1777 = vsel %vm1537, %v1750, 0.0
    %v1778 = vadd.f32 %v1776, %v1777
    %v1779 = vsel %vm1537, %v1751, 0.0
    %v1780 = vadd.f32 %v1778, %v1779
    %v1781 = vsel %vm1537, %v1752, 0.0
    %v1782 = vadd.f32 %v1780, %v1781
    %v1783 = vsel %vm1537, %v1753, 0.0
    %v1784 = vadd.f32 %v1782, %v1783
    %1785 = vadd.xlane.f32.xlu0 %v1784
    %v1786 = vpop.xlane.xlu0 %1785
    %v1787 = vrot.slane %v1786, 4
    %v1788 = vadd.f32 %v1786, %v1787
    %v1789 = vrot.slane %v1788, 2
    %v1790 = vadd.f32 %v1788, %v1789
    %v1791 = vrot.slane %v1790, 1
    %v1792 = vadd.f32 %v1790, %v1791
    %s1793 = vtos %v1792
    %v1794 = vlaneseq
    %v1795 = vshrl.u32 %v1794, 7
    %vm1796 = vcmp.eq.s32.totalorder %v1795, 0
    %vm1797 = vcmp.eq.s32.totalorder %v42, 0
    %vm1798 = vmand %vm1796, %vm1797
    %vm1799 = vcmp.eq.s32.totalorder %v42, 1
    %vm1800 = vmand %vm1796, %vm1799
    %v1801 = vstv %s1793
    %v1802 = vsel %vm1800, %v1801, 0.0
    %v1803 = vstv %s1577
    %v1804 = vsel %vm1798, %v1803, %v1802
    %1805 = vst [vmem:[%s2] sm:$0xff] %v1804
    // Predicated region
    $region14: #{_mvcl_device.1} parent=1 // pred_check
      _
    $region15: #{_mvcl_device.1} parent=1 // pred_check_branch
      %1807 = sbr.rel (0) target = $region17
    $region16: #{_mvcl_device.1} parent=1 // pred_region
      _
    $region17: #{_mvcl_device.1} parent=1 // pred_fallthru
      _
    // Predicated region
    $region18: #{_mvcl_device.1} parent=1 // pred_check
      _
    $region19: #{_mvcl_device.1} parent=1 // pred_check_branch
      %1809 = sbr.rel (0) target = $region21
    $region20: #{_mvcl_device.1} parent=1 // pred_region
      _
    $region21: #{_mvcl_device.1} parent=1 // pred_fallthru
      _
    %1810 = vsyncpa [#allocation3], 1

</llo_original>
